<compile_context>
chip_gen: v7x
topology: tpu7x:2x2x1
jax: 0.10.0
libtpu: 0.0.40
codegen_flags: <defaults>
</compile_context>

<pallas_src>
import functools

import jax
import jax.numpy as jnp
import numpy as np
from jax import lax
from jax.experimental import pallas as pl
from jax.experimental.pallas import tpu as pltpu


_NEG = float(-np.finfo(np.float32).max)
_POS = float(np.finfo(np.float32).max)


# ---------------------------------------------------------------------------
# Kernel 1: resident-K/V path (full K and V for one batch element in VMEM).
# ---------------------------------------------------------------------------
def _attn_topk_resident_kernel(q_ref, k_ref, v_ref, o_ref, *, topk, av_dtype):
    """q_ref: (tq, d)   k_ref: (Lk, d)   v_ref: (Lk, dv)   o_ref: (tq, dv)."""
    # dots[i, j] = sum_d q[i, d] * k[j, d]; contract on d directly (no K
    # transpose / XLU vxpose).  MXU operands stay in the input dtype, f32 acc.
    dots = lax.dot_general(
        q_ref[...], k_ref[...],
        dimension_numbers=(((1,), (1,)), ((), ())),
        preferred_element_type=jnp.float32)                      # (tq, Lk) f32

    neg = jnp.float32(_NEG)

    # Row max: reused both as the softmax shift and as the threshold-loop
    # init (saves one full-tile lane reduce vs. computing it twice).
    m = jnp.max(dots, axis=-1, keepdims=True)

    # k-th largest per row via iterative masked max; compare+select feeds the
    # reduce directly.  Short static trip counts unroll; long ones use a
    # fori_loop to bound live (tq, Lk) intermediates (vreg/VMEM pressure).
    def _drop_max(t):
        return jnp.max(jnp.where(dots >= t, neg, dots), axis=-1, keepdims=True)

    thr = m
    if topk - 1 <= 7:
        for _ in range(topk - 1):
            thr = _drop_max(thr)
    else:
        thr = lax.fori_loop(0, topk - 1, lambda _, t: _drop_max(t), thr)

    # Top-k membership + masked softmax.  NOTE: exact ties at the threshold
    # select ALL tied entries (torch.topk breaks ties by index) -- measure
    # zero for continuous float inputs.
    p = jnp.where(dots >= thr, jnp.exp(dots - m), 0.0)           # unnormalized, f32
    l = jnp.sum(p, axis=-1, keepdims=True)                       # (tq, 1)

    # attn·V on the MXU in av_dtype (bf16 by default for f32 inputs), f32 acc.
    acc = jnp.dot(p.astype(av_dtype), v_ref[...].astype(av_dtype),
                  preferred_element_type=jnp.float32)

    # Normalize AFTER the matmul; approx reciprocal runs in the EUP slot.
    o_ref[...] = (acc * pl.reciprocal(l, approx=True)).astype(o_ref.dtype)


# ---------------------------------------------------------------------------
# Kernel 2: Lk-tiled two-pass streaming path (long sequences / v7x VMEM).
#   grid axis 2 has length 2*nk: steps [0, nk) are pass 1 (build running
#   top-k values -> threshold), steps [nk, 2*nk) are pass 2 (masked exp-sum
#   and attn·V accumulation, flash-attention style).
# ---------------------------------------------------------------------------
def _attn_topk_tiled_kernel(q_ref, k_ref, v_ref, o_ref,
                            tv_ref, m_ref, thr_ref, l_ref, acc_ref,
                            *, topk, nk, av_dtype):
    """q_ref: (tq, d)  k_ref: (tk, d)  v_ref: (tk, dv)  o_ref: (tq, dv)
       tv_ref: (tq, tvl) running top-k values;  m/thr/l: (tq, 1);  acc: (tq, dv)."""
    s = pl.program_id(2)
    neg = jnp.float32(_NEG)
    pos = jnp.float32(_POS)

    dots = lax.dot_general(
        q_ref[...], k_ref[...],
        dimension_numbers=(((1,), (1,)), ((), ())),
        preferred_element_type=jnp.float32)                      # (tq, tk) f32

    @pl.when(s == 0)
    def _init_topk():
        tv_ref[...] = jnp.full(tv_ref.shape, neg, jnp.float32)

    @pl.when(s < nk)
    def _pass1_merge():
        # Merge this tile into the running top-k values of each row.
        cand = jnp.concatenate([dots, tv_ref[...]], axis=-1)     # (tq, tk + tvl)
        lane = lax.broadcasted_iota(jnp.int32, tv_ref.shape, 1)
        tv = jnp.full(tv_ref.shape, neg, jnp.float32)
        work = cand
        if topk <= 8:
            for j in range(topk):
                mj = jnp.max(work, axis=-1, keepdims=True)
                work = jnp.where(work >= mj, neg, work)
                tv = jnp.where(lane == j, mj, tv)
        else:
            def body(j, carry):
                w, t = carry
                mj = jnp.max(w, axis=-1, keepdims=True)
                w = jnp.where(w >= mj, neg, w)
                t = jnp.where(lane == j, mj, t)
                return w, t
            work, tv = lax.fori_loop(0, topk, body, (work, tv))
        tv_ref[...] = tv

    @pl.when(s == nk)
    def _pass2_init():
        tv = tv_ref[...]
        lane = lax.broadcasted_iota(jnp.int32, tv_ref.shape, 1)
        m_ref[...] = jnp.max(tv, axis=-1, keepdims=True)                       # row max
        thr_ref[...] = jnp.min(jnp.where(lane < topk, tv, pos),
                               axis=-1, keepdims=True)                          # k-th largest
        l_ref[...] = jnp.zeros(l_ref.shape, jnp.float32)
        acc_ref[...] = jnp.zeros(acc_ref.shape, jnp.float32)

    @pl.when(s >= nk)
    def _pass2_accumulate():
        p = jnp.where(dots >= thr_ref[...], jnp.exp(dots - m_ref[...]), 0.0)
        l_ref[...] += jnp.sum(p, axis=-1, keepdims=True)
        acc_ref[...] += jnp.dot(p.astype(av_dtype), v_ref[...].astype(av_dtype),
                                preferred_element_type=jnp.float32)

    @pl.when(s == 2 * nk - 1)
    def _finalize():
        o_ref[...] = (acc_ref[...] *
                      pl.reciprocal(l_ref[...], approx=True)).astype(o_ref.dtype)


# ---------------------------------------------------------------------------
# Sizing helpers.
# ---------------------------------------------------------------------------
def _vmem_cap_bytes():
    """~0.8x of physical per-core VMEM (v5e/v6e: ~102 MiB, v7x: ~51 MiB)."""
    try:
        phys = int(pltpu.get_tpu_info().vmem_capacity_bytes)
    except Exception:
        phys = 64 * 1024 * 1024          # conservative (v7x-sized) fallback
    return int(0.8 * phys)


def _default_q_chunk(Lq, sublane, target=256):
    """Largest MXU-filling q-chunk (<= target) that divides Lq; Lq if none."""
    if Lq <= target:
        return Lq
    t = (target // sublane) * sublane
    while t >= sublane:
        if Lq % t == 0:
            return t
        t -= sublane
    return Lq


def _resident_vmem_need(tq, Lk, d, dv, item, av_item):
    return int(1.25 * (
        2 * tq * d * item + 2 * tq * dv * item          # Q / out double buffers
        + Lk * d * item + Lk * dv * item                # single-buffered K / V
        + 4 * tq * Lk * 4 + tq * dv * 4                 # dots / p temporaries + acc
        + tq * Lk * av_item + Lk * dv * av_item))       # bf16 copies for attn·V


def _tiled_vmem_need(tq, tk, tvl, d, dv, item, av_item):
    return int(1.25 * (
        2 * tq * d * item + 2 * tq * dv * item          # Q / out double buffers
        + 2 * tk * d * item + 2 * tk * dv * item        # K / V double buffers (streamed)
        + tq * tvl * 4 + tq * dv * 4 + 3 * tq * 4       # scratches
        + 4 * tq * (tk + tvl) * 4                       # dots / cand / p temporaries
        + tq * tk * av_item + tk * dv * av_item))       # bf16 copies for attn·V


def _auto_k_chunk(Lk, tq, tvl, d, dv, item, av_item, cap):
    t = min((Lk // 128) * 128, 2048)
    while t >= 128:
        if Lk % t == 0 and _tiled_vmem_need(tq, t, tvl, d, dv, item, av_item) <= cap:
            return t
        t -= 128
    return None


def _single_buffered_spec(block_shape, index_map):
    """BlockSpec with single (non-double) buffering: the block index only
    changes at batch boundaries, so halving resident VMEM costs one pipeline
    bubble per batch.  Falls back to the default spec if pipeline_mode /
    pl.Buffered is unavailable in this JAX version."""
    try:
        return pl.BlockSpec(block_shape, index_map, pipeline_mode=pl.Buffered(1))
    except Exception:
        return pl.BlockSpec(block_shape, index_map)


# ---------------------------------------------------------------------------
# Public wrapper.
# ---------------------------------------------------------------------------
def attention_nocache_sparse(Q, K, V, *, topk, q_chunk_size=None, k_chunk_size=None,
                             av_matmul_dtype=None):
    """out = softmax_over_topk(Q · Kᵀ) · V; non-top-k attention weights are 0.

    Q: [B, Lq, d], K: [B, Lk, d], V: [B, Lk, dv]  ->  out: [B, Lq, dv]

    q_chunk_size: the module's args['Q_chunk_size'] (None/<=0 -> auto, sized
                  to fill the MXU).
    k_chunk_size: None -> K/V kept resident in VMEM when they fit, otherwise
                  the Lk-streaming path is auto-selected; an explicit multiple
                  of 128 forces the streaming path with that tile.
    av_matmul_dtype: operand dtype for the attn·V MXU matmul (default: bf16
                  for f32 inputs, else the input dtype).  Accumulation is f32.
    """
    # TODO(synk): optional boolean `mask` / `causal_masking` paths of the
    # PyTorch module are not implemented (default mask=None path only).
    B, Lq, d = Q.shape
    _, Lk, dv = V.shape
    assert K.shape == (B, Lk, d)
    assert 0 < topk <= Lk

    in_dtype = jnp.dtype(Q.dtype)
    av_dtype = (jnp.dtype(av_matmul_dtype) if av_matmul_dtype is not None
                else (jnp.dtype(jnp.bfloat16) if in_dtype == jnp.dtype(jnp.float32)
                      else in_dtype))

    item = in_dtype.itemsize
    av_item = jnp.dtype(av_dtype).itemsize
    sublane = max(8, 32 // item)          # f32: 8, bf16: 16, int8/fp8: 32

    # --- q-chunk (M dim of both matmuls): default fills the MXU rows. ---
    if q_chunk_size is not None and q_chunk_size > 0:
        tq = q_chunk_size
    else:
        tq = _default_q_chunk(Lq, sublane)
    assert Lq % tq == 0, "Q_chunk_size must divide Lq for this kernel"
    assert tq == Lq or tq % sublane == 0, (
        f"Q_chunk_size must be a multiple of {sublane} for dtype {in_dtype}")

    cap = _vmem_cap_bytes()
    tvl = max(128, ((topk + 127) // 128) * 128)   # running top-k scratch lane width

    # --- resident vs. Lk-streaming path selection ---
    use_tiled = k_chunk_size is not None and 0 < k_chunk_size < Lk
    tk = k_chunk_size if use_tiled else Lk
    if not use_tiled:
        need = _resident_vmem_need(tq, Lk, d, dv, item, av_item)
        if need > cap:
            tk = _auto_k_chunk(Lk, tq, tvl, d, dv, item, av_item, cap)
            assert tk is not None, (
                f"resident K/V needs ~{need} B (> VMEM cap {cap} B) and Lk={Lk} is "
                "not tileable by a multiple of 128; reduce Q_chunk_size or pass "
                "a k_chunk_size.")
            use_tiled = True

    if not use_tiled:
        # ----- resident path: batch OUTER, q-chunk INNER so the K/V block
        # index is constant across the inner axis (no K/V re-DMA). -----
        grid = (B, Lq // tq)
        kernel = functools.partial(_attn_topk_resident_kernel,
                                   topk=topk, av_dtype=av_dtype)
        return pl.pallas_call(
            kernel,
            out_shape=jax.ShapeDtypeStruct((B, Lq, dv), Q.dtype),
            grid_spec=pltpu.PrefetchScalarGridSpec(
                num_scalar_prefetch=0,
                grid=grid,
                in_specs=[
                    pl.BlockSpec((None, tq, d), lambda b, i: (b, i, 0)),        # Q chunk
                    _single_buffered_spec((None, Lk, d), lambda b, i: (b, 0, 0)),   # full K
                    _single_buffered_spec((None, Lk, dv), lambda b, i: (b, 0, 0)),  # full V
                ],
                out_specs=pl.BlockSpec((None, tq, dv), lambda b, i: (b, i, 0)),
            ),
            compiler_params=pltpu.CompilerParams(
                dimension_semantics=("parallel", "parallel"),
                vmem_limit_bytes=cap),
        )(Q, K, V)

    # ----- Lk-tiled two-pass streaming path -----
    assert Lk % tk == 0 and tk % 128 == 0, \
        "k_chunk_size must be a multiple of 128 that divides Lk"
    need = _tiled_vmem_need(tq, tk, tvl, d, dv, item, av_item)
    assert need <= cap, (
        f"estimated VMEM need ~{need} B exceeds the per-core cap {cap} B; "
        "reduce Q_chunk_size / k_chunk_size")

    nk = Lk // tk
    grid = (B, Lq // tq, 2 * nk)
    kernel = functools.partial(_attn_topk_tiled_kernel,
                               topk=topk, nk=nk, av_dtype=av_dtype)
    return pl.pallas_call(
        kernel,
        out_shape=jax.ShapeDtypeStruct((B, Lq, dv), Q.dtype),
        grid_spec=pltpu.PrefetchScalarGridSpec(
            num_scalar_prefetch=0,
            grid=grid,
            in_specs=[
                pl.BlockSpec((None, tq, d), lambda b, i, s: (b, i, 0)),          # Q chunk
                pl.BlockSpec((None, tk, d), lambda b, i, s: (b, s % nk, 0)),     # K tile (both passes)
                pl.BlockSpec((None, tk, dv),
                             lambda b, i, s: (b, jnp.where(s >= nk, s - nk, 0), 0)),  # V tile (pass 2)
            ],
            out_specs=pl.BlockSpec((None, tq, dv), lambda b, i, s: (b, i, 0)),
            scratch_shapes=[
                pltpu.VMEM((tq, tvl), jnp.float32),   # running top-k values
                pltpu.VMEM((tq, 1), jnp.float32),     # row max
                pltpu.VMEM((tq, 1), jnp.float32),     # threshold (k-th largest)
                pltpu.VMEM((tq, 1), jnp.float32),     # softmax denominator
                pltpu.VMEM((tq, dv), jnp.float32),    # output accumulator
            ],
        ),
        compiler_params=pltpu.CompilerParams(
            dimension_semantics=("parallel", "parallel", "arbitrary"),
            vmem_limit_bytes=cap),
    )(Q, K, V)


# ---------------------------------------------------------------------------
# Reference + demo.
# ---------------------------------------------------------------------------
def _reference_np(Q, K, V, topk):
    """float64 numpy reference mirroring the PyTorch module semantics."""
    Q = np.asarray(Q, np.float64)
    K = np.asarray(K, np.float64)
    V = np.asarray(V, np.float64)
    dots = np.einsum("bqd,bkd->bqk", Q, K)
    idx = np.argpartition(-dots, topk - 1, axis=-1)[..., :topk]      # topk(dots)
    top = np.take_along_axis(dots, idx, axis=-1)
    w = np.exp(top - top.max(-1, keepdims=True))                     # softmax(top_dots)
    w = w / w.sum(-1, keepdims=True)
    attn = np.zeros_like(dots)
    np.put_along_axis(attn, idx, w, axis=-1)                         # sparse_coo -> dense
    return np.einsum("bqk,bkd->bqd", attn, V)


if __name__ == "__main__":
    keys = jax.random.split(jax.random.PRNGKey(0), 6)
    d, dv, topk = 128, 128, 4

    # ---- Config A: resident-K/V path, tq=256 (MXU-filling), default bf16
    #      operands for the attn·V matmul. ----
    B, Lq, Lk = 2, 512, 256
    Q = jax.random.normal(keys[0], (B, Lq, d), dtype=jnp.float32)
    K = jax.random.normal(keys[1], (B, Lk, d), dtype=jnp.float32)
    V = jax.random.normal(keys[2], (B, Lk, dv), dtype=jnp.float32)

    out = attention_nocache_sparse(Q, K, V, topk=topk, q_chunk_size=256)
    out = jax.block_until_ready(out)
    ref = _reference_np(Q, K, V, topk)
    np.testing.assert_allclose(np.asarray(out, np.float64), ref, rtol=2.5e-2, atol=2.5e-2)

    # ---- Config B: Lk-tiled two-pass streaming path (long-Lk / v7x design),
    #      f32 attn·V operands so the check stays tight. ----
    B2, Lq2, Lk2 = 2, 256, 512
    Q2 = jax.random.normal(keys[3], (B2, Lq2, d), dtype=jnp.float32)
    K2 = jax.random.normal(keys[4], (B2, Lk2, d), dtype=jnp.float32)
    V2 = jax.random.normal(keys[5], (B2, Lk2, dv), dtype=jnp.float32)

    out2 = attention_nocache_sparse(Q2, K2, V2, topk=topk, k_chunk_size=128,
                                    av_matmul_dtype=jnp.float32)
    out2 = jax.block_until_ready(out2)
    ref2 = _reference_np(Q2, K2, V2, topk)
    np.testing.assert_allclose(np.asarray(out2, np.float64), ref2, rtol=5e-3, atol=5e-3)

    print("KERNEL_OK")
</pallas_src>

<mosaic_0001>
module attributes {stable_mosaic.version = 11 : i64} {
  func.func @_attn_topk_resident_kernel(%arg0: i32, %arg1: i32, %arg2: memref<1x256x128xf32, #tpu.memory_space<vmem>>, %arg3: memref<1x256x128xf32, #tpu.memory_space<vmem>>, %arg4: memref<1x256x128xf32, #tpu.memory_space<vmem>>, %arg5: memref<1x256x128xf32, #tpu.memory_space<vmem>>) attributes {dimension_semantics = [#tpu.dimension_semantics<parallel>, #tpu.dimension_semantics<parallel>], iteration_bounds = array<i64: 2, 2>, scalar_prefetch = 0 : i64, scratch_operands = 0 : i64, tpu.core_type = #tpu.core_type<tc>, window_params = [{transform_indices = @transform_0, window_bounds = array<i64: 1, 256, 128>}, {pipeline_mode = #tpu.pipeline_mode<synchronous>, transform_indices = @transform_1, window_bounds = array<i64: 1, 256, 128>}, {pipeline_mode = #tpu.pipeline_mode<synchronous>, transform_indices = @transform_2, window_bounds = array<i64: 1, 256, 128>}, {transform_indices = @transform_3, window_bounds = array<i64: 1, 256, 128>}]} {
    %c0 = arith.constant 0 : index
    %c0_0 = arith.constant 0 : index
    %c0_1 = arith.constant 0 : index
    %0 = vector.load %arg2[%c0, %c0_0, %c0_1] : memref<1x256x128xf32, #tpu.memory_space<vmem>>, vector<1x256x128xf32>
    %1 = vector.shape_cast %0 : vector<1x256x128xf32> to vector<256x128xf32>
    %c0_2 = arith.constant 0 : index
    %c0_3 = arith.constant 0 : index
    %c0_4 = arith.constant 0 : index
    %2 = vector.load %arg3[%c0_2, %c0_3, %c0_4] : memref<1x256x128xf32, #tpu.memory_space<vmem>>, vector<1x256x128xf32>
    %3 = vector.shape_cast %2 : vector<1x256x128xf32> to vector<256x128xf32>
    %cst = arith.constant dense<0.000000e+00> : vector<256x256xf32>
    %4 = tpu.matmul %1, %3, %cst {dimension_numbers = #tpu.dot_dimension_numbers<[1], [1], [0], [0], [0, 0, 1, 0], [], []>} : vector<256x128xf32>, vector<256x128xf32>, vector<256x256xf32> -> vector<256x256xf32>
    %cst_5 = arith.constant dense<0xFF800000> : vector<256xf32>
    %5 = vector.multi_reduction <maximumf>, %4, %cst_5 [1] : vector<256x256xf32> to vector<256xf32>
    %6 = vector.shape_cast %5 : vector<256xf32> to vector<256x1xf32>
    %7 = vector.broadcast %6 : vector<256x1xf32> to vector<256x256xf32>
    %8 = arith.cmpf oge, %4, %7 : vector<256x256xf32>
    %cst_6 = arith.constant -3.40282347E+38 : f32
    %9 = vector.broadcast %cst_6 : f32 to vector<256x256xf32>
    %10 = arith.select %8, %9, %4 : vector<256x256xi1>, vector<256x256xf32>
    %cst_7 = arith.constant dense<0xFF800000> : vector<256xf32>
    %11 = vector.multi_reduction <maximumf>, %10, %cst_7 [1] : vector<256x256xf32> to vector<256xf32>
    %12 = vector.shape_cast %11 : vector<256xf32> to vector<256x1xf32>
    %13 = vector.broadcast %12 : vector<256x1xf32> to vector<256x256xf32>
    %14 = arith.cmpf oge, %4, %13 : vector<256x256xf32>
    %cst_8 = arith.constant -3.40282347E+38 : f32
    %15 = vector.broadcast %cst_8 : f32 to vector<256x256xf32>
    %16 = arith.select %14, %15, %4 : vector<256x256xi1>, vector<256x256xf32>
    %cst_9 = arith.constant dense<0xFF800000> : vector<256xf32>
    %17 = vector.multi_reduction <maximumf>, %16, %cst_9 [1] : vector<256x256xf32> to vector<256xf32>
    %18 = vector.shape_cast %17 : vector<256xf32> to vector<256x1xf32>
    %19 = vector.broadcast %18 : vector<256x1xf32> to vector<256x256xf32>
    %20 = arith.cmpf oge, %4, %19 : vector<256x256xf32>
    %cst_10 = arith.constant -3.40282347E+38 : f32
    %21 = vector.broadcast %cst_10 : f32 to vector<256x256xf32>
    %22 = arith.select %20, %21, %4 : vector<256x256xi1>, vector<256x256xf32>
    %cst_11 = arith.constant dense<0xFF800000> : vector<256xf32>
    %23 = vector.multi_reduction <maximumf>, %22, %cst_11 [1] : vector<256x256xf32> to vector<256xf32>
    %24 = vector.shape_cast %23 : vector<256xf32> to vector<256x1xf32>
    %25 = vector.broadcast %24 : vector<256x1xf32> to vector<256x256xf32>
    %26 = arith.cmpf oge, %4, %25 : vector<256x256xf32>
    %27 = vector.broadcast %6 : vector<256x1xf32> to vector<256x256xf32>
    %28 = arith.subf %4, %27 : vector<256x256xf32>
    %29 = math.exp %28 : vector<256x256xf32>
    %cst_12 = arith.constant 0.000000e+00 : f32
    %30 = vector.broadcast %cst_12 : f32 to vector<256x256xf32>
    %31 = arith.select %26, %29, %30 : vector<256x256xi1>, vector<256x256xf32>
    %cst_13 = arith.constant dense<0.000000e+00> : vector<256xf32>
    %32 = vector.multi_reduction <add>, %31, %cst_13 [1] : vector<256x256xf32> to vector<256xf32>
    %33 = vector.shape_cast %32 : vector<256xf32> to vector<256x1xf32>
    %34 = arith.truncf %31 : vector<256x256xf32> to vector<256x256xbf16>
    %c0_14 = arith.constant 0 : index
    %c0_15 = arith.constant 0 : index
    %c0_16 = arith.constant 0 : index
    %35 = vector.load %arg4[%c0_14, %c0_15, %c0_16] : memref<1x256x128xf32, #tpu.memory_space<vmem>>, vector<1x256x128xf32>
    %36 = vector.shape_cast %35 : vector<1x256x128xf32> to vector<256x128xf32>
    %37 = arith.truncf %36 : vector<256x128xf32> to vector<256x128xbf16>
    %cst_17 = arith.constant dense<0.000000e+00> : vector<256x128xf32>
    %38 = tpu.matmul %34, %37, %cst_17 {dimension_numbers = #tpu.dot_dimension_numbers<[1], [0], [0], [1], [0, 0, 1, 1], [], []>} : vector<256x256xbf16>, vector<256x128xbf16>, vector<256x128xf32> -> vector<256x128xf32>
    %39 = tpu.reciprocal %33 {approx = true} : vector<256x1xf32> -> vector<256x1xf32>
    %40 = vector.broadcast %39 : vector<256x1xf32> to vector<256x128xf32>
    %41 = arith.mulf %38, %40 : vector<256x128xf32>
    %c0_18 = arith.constant 0 : index
    %c0_19 = arith.constant 0 : index
    %c0_20 = arith.constant 0 : index
    %42 = vector.load %arg5[%c0_18, %c0_19, %c0_20] : memref<1x256x128xf32, #tpu.memory_space<vmem>>, vector<1x256x128xf32>
    %43 = vector.shape_cast %42 : vector<1x256x128xf32> to vector<256x128xf32>
    %44 = vector.shape_cast %41 : vector<256x128xf32> to vector<1x256x128xf32>
    tpu.vector_store %arg5[%c0_18, %c0_19, %c0_20], %44 {strides = array<i32>} : memref<1x256x128xf32, #tpu.memory_space<vmem>>, vector<1x256x128xf32>,
    return
  }
  func.func @transform_0(%arg0: i32, %arg1: i32) -> (i32, i32, i32) {
    %c0_i32 = arith.constant 0 : i32
    %c0_i32_0 = arith.constant 0 : i32
    return %arg0, %arg1, %c0_i32 : i32, i32, i32
  }
  func.func @transform_1(%arg0: i32, %arg1: i32) -> (i32, i32, i32) {
    %c0_i32 = arith.constant 0 : i32
    %c0_i32_0 = arith.constant 0 : i32
    %c0_i32_1 = arith.constant 0 : i32
    return %arg0, %c0_i32, %c0_i32_0 : i32, i32, i32
  }
  func.func @transform_2(%arg0: i32, %arg1: i32) -> (i32, i32, i32) {
    %c0_i32 = arith.constant 0 : i32
    %c0_i32_0 = arith.constant 0 : i32
    %c0_i32_1 = arith.constant 0 : i32
    return %arg0, %c0_i32, %c0_i32_0 : i32, i32, i32
  }
  func.func @transform_3(%arg0: i32, %arg1: i32) -> (i32, i32, i32) {
    %c0_i32 = arith.constant 0 : i32
    %c0_i32_0 = arith.constant 0 : i32
    return %arg0, %arg1, %c0_i32 : i32, i32, i32
  }
}

</mosaic_0001>

<llo_original>
// kernel: tpu_custom_call.1
$region0: #{tpu_custom_call.1}
  #allocation0 [shape = 'u32[]', space=smem, size = 0x4, offset = 0x4, fixed_abs, tag = 'smem constant byte address 0x4 - core index']
  #allocation1 [shape = 'u32[144,128]{1,0:T(1,128)}', space=vmem, size = 0x12000, scoped, tag = 'internal scratch']
  %s0 = inlined_call_operand.hbm [shape: f32[2,512,128], index: 0, kind: input, shape index: {}]
  %s1 = inlined_call_operand.hbm [shape: f32[2,256,128], index: 1, kind: input, shape index: {}]
  %s2 = inlined_call_operand.hbm [shape: f32[2,256,128], index: 2, kind: input, shape index: {}]
  %s3 = inlined_call_operand.hbm [shape: f32[2,512,128], index: 3, kind: output, shape index: {}]
  %s4 = sld [smem:[#allocation0]]
  $region57: #{tpu_custom_call.1} parent=0
    _
  %s6 = ssub.s32 1, %s4
  %s7 = scalar_select 0, %s6, %s4
  $region1: #{tpu_custom_call.1} parent=0
    #allocation2 [shape = 'u8[262144]{0}', space=vmem, size = 0x40000, scoped, tag = 'input window, operand 0']
    #allocation3 [shape = 's32[2]{0}', space=sflag, size = 0x8, scoped, tag = 'scoped memory for tpu_custom_call.1']
    #allocation4 [shape = 's32[2]{0}', space=sflag, size = 0x8, scoped, tag = 'scoped memory for tpu_custom_call.1']
    #allocation5 [shape = 'u8[131072]{0}', space=vmem, size = 0x20000, scoped, tag = 'input window, operand 1, single buffered']
    #allocation6 [shape = 's32[1]{0}', space=sflag, size = 0x4, scoped, tag = 'scoped memory for tpu_custom_call.1']
    #allocation7 [shape = 'u8[131072]{0}', space=vmem, size = 0x20000, scoped, tag = 'input window, operand 2, single buffered']
    #allocation8 [shape = 'u8[262144]{0}', space=vmem, size = 0x40000, scoped, tag = 'output window, operand 0']
    %8 = vsyncpa [#allocation3], 0
    %s9 = scalar_lea.sflag [#allocation3], 1
    %10 = vsyncpa %s9, 0
    %11 = vsyncpa [#allocation6], 0
    %12 = vsyncpa [#allocation4], 0
    %s13 = scalar_lea.sflag [#allocation4], 1
    %14 = vsyncpa %s13, 0
    loop: start=0, step=1, limit=6
    $region2: #{tpu_custom_call.1} parent=1 // loop_pre_header
      _
    $region3: #{tpu_custom_call.1} parent=1 // loop_header
      %s16 = sphi 0, %s20
      %p17 = scmp.ge.s32.totalorder %s16, 6
      %s23 = sphi 0, %s35
      %s24 = sphi 0, %s31
      %s25 = sphi 0, %s23
      %s26 = sphi 0, %s24
      %s27 = sphi 0, %s25
      %s28 = sphi 0, %s26
      %s40 = sphi 0, %s42
      %s43 = sphi 0, %s40
      %s44 = sphi 0, %s43
      %s60 = sphi 0, %s44
      %s66 = sphi 0, %s68
      %s69 = sphi 0, %s66
      %s70 = sphi 0, %s69
      %s86 = sphi 0, %s70
      %s92 = sphi 0, %s94
      %s95 = sphi 0, %s92
      %s96 = sphi 0, %s95
      %s112 = sphi 0, %s96
      %s120 = sphi 0, %s122
      %s123 = sphi 0, %s120
      %s124 = sphi 0, %s123
      %s140 = sphi 0, %s124
    $region4: #{tpu_custom_call.1} parent=1 // loop_header_branch
      %19 = sbr.rel (%p17) target = $region8
    $region5: #{tpu_custom_call.1} parent=1 // loop_body
      %s21 = ssub.s32 %s16, 1
      %s22 = ssub.s32 %s16, 2
      %s29 = sadd.s32 1, %s24
      %p30 = scmp.ge.s32.totalorder %s29, 2
      %s31 = scalar_select %p30, 0, %s29
      %s32 = sadd.s32 1, %s23
      %s33 = scalar_select %p30, %s32, %s23
      %p34 = scmp.ge.s32.totalorder %s33, 2
      %s35 = scalar_select %p34, 0, %s33
      %s36 = ssub.s32 %s23, %s35
      %s37 = ssub.s32 %s24, %s31
      %s38 = sor.u32 %s36, %s37
      %p39 = scmp.eq.s32.totalorder %s38, 0
      %s41 = sadd.s32 %s40, 1
      %s42 = scalar_select %p39, %s40, %s41
      %p45 = pneg %p39
      %p46 = scmp.eq.s32.totalorder %s16, 3
      %p47 = por %p45, %p46
      %p48 = scmp.ne.s32.totalorder %s40, %s43
      %p49 = scmp.eq.s32.totalorder %s16, 0
      %p50 = por %p48, %p49
      %p51 = scmp.ne.s32.totalorder %s40, %s43
      %p52 = scmp.eq.s32.totalorder %s21, 3
      %p53 = por %p51, %p52
      %p54 = scmp.ne.s32.totalorder %s43, %s44
      %p55 = scmp.eq.s32.totalorder %s21, 0
      %p56 = por %p54, %p55
      %p57 = scmp.ne.s32.totalorder %s43, %s44
      %p58 = scmp.eq.s32.totalorder %s22, 3
      %p59 = por %p57, %p58
      %p61 = scmp.ne.s32.totalorder %s44, %s60
      %p62 = scmp.eq.s32.totalorder %s22, 0
      %p63 = por %p61, %p62
      %s64 = ssub.s32 %s23, %s35
      %p65 = scmp.eq.s32.totalorder %s64, 0
      %s67 = sadd.s32 %s66, 1
      %s68 = scalar_select %p65, %s66, %s67
      %p71 = pneg %p65
      %p72 = scmp.eq.s32.totalorder %s16, 3
      %p73 = por %p71, %p72
      %p74 = scmp.ne.s32.totalorder %s66, %s69
      %p75 = scmp.eq.s32.totalorder %s16, 0
      %p76 = por %p74, %p75
      %p77 = scmp.ne.s32.totalorder %s66, %s69
      %p78 = scmp.eq.s32.totalorder %s21, 3
      %p79 = por %p77, %p78
      %p80 = scmp.ne.s32.totalorder %s69, %s70
      %p81 = scmp.eq.s32.totalorder %s21, 0
      %p82 = por %p80, %p81
      %p83 = scmp.ne.s32.totalorder %s69, %s70
      %p84 = scmp.eq.s32.totalorder %s22, 3
      %p85 = por %p83, %p84
      %p87 = scmp.ne.s32.totalorder %s70, %s86
      %p88 = scmp.eq.s32.totalorder %s22, 0
      %p89 = por %p87, %p88
      %s90 = ssub.s32 %s23, %s35
      %p91 = scmp.eq.s32.totalorder %s90, 0
      %s93 = sadd.s32 %s92, 1
      %s94 = scalar_select %p91, %s92, %s93
      %p97 = pneg %p91
      %p98 = scmp.eq.s32.totalorder %s16, 3
      %p99 = por %p97, %p98
      %p100 = scmp.ne.s32.totalorder %s92, %s95
      %p101 = scmp.eq.s32.totalorder %s16, 0
      %p102 = por %p100, %p101
      %p103 = scmp.ne.s32.totalorder %s92, %s95
      %p104 = scmp.eq.s32.totalorder %s21, 3
      %p105 = por %p103, %p104
      %p106 = scmp.ne.s32.totalorder %s95, %s96
      %p107 = scmp.eq.s32.totalorder %s21, 0
      %p108 = por %p106, %p107
      %p109 = scmp.ne.s32.totalorder %s95, %s96
      %p110 = scmp.eq.s32.totalorder %s22, 3
      %p111 = por %p109, %p110
      %p113 = scmp.ne.s32.totalorder %s96, %s112
      %p114 = scmp.eq.s32.totalorder %s22, 0
      %p115 = por %p113, %p114
      %s116 = ssub.s32 %s23, %s35
      %s117 = ssub.s32 %s24, %s31
      %s118 = sor.u32 %s116, %s117
      %p119 = scmp.eq.s32.totalorder %s118, 0
      %s121 = sadd.s32 %s120, 1
      %s122 = scalar_select %p119, %s120, %s121
      %p125 = pneg %p119
      %p126 = scmp.eq.s32.totalorder %s16, 3
      %p127 = por %p125, %p126
      %p128 = scmp.ne.s32.totalorder %s120, %s123
      %p129 = scmp.eq.s32.totalorder %s16, 0
      %p130 = por %p128, %p129
      %p131 = scmp.ne.s32.totalorder %s120, %s123
      %p132 = scmp.eq.s32.totalorder %s21, 3
      %p133 = por %p131, %p132
      %p134 = scmp.ne.s32.totalorder %s123, %s124
      %p135 = scmp.eq.s32.totalorder %s21, 0
      %p136 = por %p134, %p135
      %p137 = scmp.ne.s32.totalorder %s123, %s124
      %p138 = scmp.eq.s32.totalorder %s22, 3
      %p139 = por %p137, %p138
      %p141 = scmp.ne.s32.totalorder %s124, %s140
      %p142 = scmp.eq.s32.totalorder %s22, 0
      %p143 = por %p141, %p142
      %p144 = scmp.le.s32.totalorder 1, %s16
      %p145 = scmp.lt.s32.totalorder %s16, 5
      %p146 = pnand %p144, %p145
      %p147 = pneg %p146
      // Predicated region
      $region9: #{tpu_custom_call.1} parent=5 // pred_check
        _
      $region10: #{tpu_custom_call.1} parent=5 // pred_check_branch
        %149 = sbr.rel (%p146) target = $region12
      $region11: #{tpu_custom_call.1} parent=5 // pred_region
        %s150 = ssub.s32 %s16, 1
        // Predicated region
        $region13: #{tpu_custom_call.1} parent=11 // pred_check
          %p151 = pneg %p82
        $region14: #{tpu_custom_call.1} parent=11 // pred_check_branch
          %153 = sbr.rel (%p151) target = $region16
        $region15: #{tpu_custom_call.1} parent=11 // pred_region
          %s155 = ssub.s32 4096, 4096
          %156 = vsyncadd [#allocation6], %s155
          %s157 = smul.addr %s25, 32
          %s158 = smul.addr %s157, 128
          %s159 = scalar_lea.hbm %s1, %s158
          %s160 = sshll.u32 [#allocation5], 4
          %s161 = int_to_ptr.vmem [resolvable:$true] %s160
          %166 = dma.hbm_to_vmem [thread:$0]  %s159, 4096, %s161, [#allocation6], 128, 128, 8
        $region16: #{tpu_custom_call.1} parent=11 // pred_fallthru
          _
        // Predicated region
        $region17: #{tpu_custom_call.1} parent=11 // pred_check
          %p167 = pneg %p108
        $region18: #{tpu_custom_call.1} parent=11 // pred_check_branch
          %169 = sbr.rel (%p167) target = $region20
        $region19: #{tpu_custom_call.1} parent=11 // pred_region
          %s171 = ssub.s32 4096, 4096
          %172 = vsyncadd [#allocation6], %s171
          %s173 = smul.addr %s25, 32
          %s174 = smul.addr %s173, 128
          %s175 = scalar_lea.hbm %s2, %s174
          %s176 = sshll.u32 [#allocation7], 4
          %s177 = int_to_ptr.vmem [resolvable:$true] %s176
          %182 = dma.hbm_to_vmem [thread:$0]  %s175, 4096, %s177, [#allocation6], 128, 128, 8
        $region20: #{tpu_custom_call.1} parent=11 // pred_fallthru
          _
      $region12: #{tpu_custom_call.1} parent=5 // pred_fallthru
        _
      %p183 = scmp.lt.s32.totalorder %s16, 4
      // Predicated region
      $region21: #{tpu_custom_call.1} parent=5 // pred_check
        %p184 = pneg %p183
      $region22: #{tpu_custom_call.1} parent=5 // pred_check_branch
        %186 = sbr.rel (%p184) target = $region24
      $region23: #{tpu_custom_call.1} parent=5 // pred_region
        // Predicated region
        $region25: #{tpu_custom_call.1} parent=23 // pred_check
          %p187 = pneg %p50
        $region26: #{tpu_custom_call.1} parent=23 // pred_check_branch
          %189 = sbr.rel (%p187) target = $region28
        $region27: #{tpu_custom_call.1} parent=23 // pred_region
          %s190 = sand.u32 %s40, 1
          %s191 = scalar_lea.sflag [#allocation3], %s190
          %s192 = sand.u32 %s40, 1
          %s193 = smul.addr %s192, 256
          %s194 = scalar_lea.vmem [#allocation2], %s193
          %s195 = smul.u32 32, %s24
          %s197 = ssub.s32 4096, 4096
          %198 = vsyncadd %s191, %s197
          %s199 = smul.addr %s23, 64
          %s200 = sadd.s32 %s195, %s199
          %s201 = smul.addr %s200, 128
          %s202 = scalar_lea.hbm %s0, %s201
          %s203 = sshll.u32 %s194, 4
          %s204 = int_to_ptr.vmem [resolvable:$true] %s203
          %209 = dma.hbm_to_vmem [thread:$0]  %s202, 4096, %s204, %s191, 128, 128, 8
        $region28: #{tpu_custom_call.1} parent=23 // pred_fallthru
          _
      $region24: #{tpu_custom_call.1} parent=5 // pred_fallthru
        _
      %p210 = scmp.le.s32.totalorder 1, %s16
      %p211 = scmp.lt.s32.totalorder %s16, 5
      %p212 = pnand %p210, %p211
      %p213 = pneg %p212
      // Predicated region
      $region29: #{tpu_custom_call.1} parent=5 // pred_check
        _
      $region30: #{tpu_custom_call.1} parent=5 // pred_check_branch
        %215 = sbr.rel (%p212) target = $region32
      $region31: #{tpu_custom_call.1} parent=5 // pred_region
        %s216 = ssub.s32 %s16, 1
        %s217 = sand.u32 %s43, 1
        %s218 = scalar_lea.sflag [#allocation3], %s217
        %s219 = sand.u32 %s43, 1
        %s220 = smul.addr %s219, 256
        %s221 = scalar_lea.vmem [#allocation2], %s220
        // Predicated region
        $region33: #{tpu_custom_call.1} parent=31 // pred_check
          %p222 = pneg %p56
        $region34: #{tpu_custom_call.1} parent=31 // pred_check_branch
          %224 = sbr.rel (%p222) target = $region36
        $region35: #{tpu_custom_call.1} parent=31 // pred_region
          %225 = dma.done %s218, 4096
        $region36: #{tpu_custom_call.1} parent=31 // pred_fallthru
          _
        // Predicated region
        $region37: #{tpu_custom_call.1} parent=31 // pred_check
          %p226 = pneg %p82
        $region38: #{tpu_custom_call.1} parent=31 // pred_check_branch
          %228 = sbr.rel (%p226) target = $region40
        $region39: #{tpu_custom_call.1} parent=31 // pred_region
          %229 = dma.done [#allocation6], 4096
        $region40: #{tpu_custom_call.1} parent=31 // pred_fallthru
          _
        // Predicated region
        $region41: #{tpu_custom_call.1} parent=31 // pred_check
          %p230 = pneg %p108
        $region42: #{tpu_custom_call.1} parent=31 // pred_check_branch
          %232 = sbr.rel (%p230) target = $region44
        $region43: #{tpu_custom_call.1} parent=31 // pred_region
          %233 = dma.done [#allocation6], 4096
        $region44: #{tpu_custom_call.1} parent=31 // pred_fallthru
          _
        %s234 = sand.u32 %s43, 1
        %s235 = scalar_lea.sflag [#allocation3], %s234
        %s236 = sand.u32 %s43, 1
        %s237 = smul.addr %s236, 256
        %s238 = scalar_lea.vmem [#allocation2], %s237
        %p239 = pneg %p56
        %p240 = pneg %p53
        %p241 = pneg %p82
        %p242 = pneg %p79
        %p243 = pneg %p108
        %p244 = pneg %p105
        %p245 = pneg %p136
        %p246 = pneg %p133
        %s247 = sand.u32 %s123, 1
        %s248 = scalar_lea.sflag [#allocation4], %s247
        %s249 = sand.u32 %s123, 1
        %s250 = smul.addr %s249, 256
        %s251 = scalar_lea.vmem [#allocation8], %s250
        %s252 = smul.u32 32, %s26
        %s253 = smul.u32 32, %s26
        %v255 = vld [vmem:[%s221] sm:$0xff]
        %v256 = vld [vmem:[%s221 + $0x8] sm:$0xff]
        %v257 = vld [vmem:[%s221 + $0x10] sm:$0xff]
        %v258 = vld [vmem:[%s221 + $0x18] sm:$0xff]
        %v259 = vld [vmem:[%s221 + $0x20] sm:$0xff]
        %v260 = vld [vmem:[%s221 + $0x28] sm:$0xff]
        %v261 = vld [vmem:[%s221 + $0x30] sm:$0xff]
        %v262 = vld [vmem:[%s221 + $0x38] sm:$0xff]
        %v263 = vld [vmem:[%s221 + $0x40] sm:$0xff]
        %v264 = vld [vmem:[%s221 + $0x48] sm:$0xff]
        %v265 = vld [vmem:[%s221 + $0x50] sm:$0xff]
        %v266 = vld [vmem:[%s221 + $0x58] sm:$0xff]
        %v267 = vld [vmem:[%s221 + $0x60] sm:$0xff]
        %v268 = vld [vmem:[%s221 + $0x68] sm:$0xff]
        %v269 = vld [vmem:[%s221 + $0x70] sm:$0xff]
        %v270 = vld [vmem:[%s221 + $0x78] sm:$0xff]
        %v271 = vld [vmem:[%s221 + $0x80] sm:$0xff]
        %v272 = vld [vmem:[%s221 + $0x88] sm:$0xff]
        %v273 = vld [vmem:[%s221 + $0x90] sm:$0xff]
        %v274 = vld [vmem:[%s221 + $0x98] sm:$0xff]
        %v275 = vld [vmem:[%s221 + $0xa0] sm:$0xff]
        %v276 = vld [vmem:[%s221 + $0xa8] sm:$0xff]
        %v277 = vld [vmem:[%s221 + $0xb0] sm:$0xff]
        %v278 = vld [vmem:[%s221 + $0xb8] sm:$0xff]
        %v279 = vld [vmem:[%s221 + $0xc0] sm:$0xff]
        %v280 = vld [vmem:[%s221 + $0xc8] sm:$0xff]
        %v281 = vld [vmem:[%s221 + $0xd0] sm:$0xff]
        %v282 = vld [vmem:[%s221 + $0xd8] sm:$0xff]
        %v283 = vld [vmem:[%s221 + $0xe0] sm:$0xff]
        %v284 = vld [vmem:[%s221 + $0xe8] sm:$0xff]
        %v285 = vld [vmem:[%s221 + $0xf0] sm:$0xff]
        %v286 = vld [vmem:[%s221 + $0xf8] sm:$0xff]
        %v287 = vld [vmem:[#allocation5] sm:$0xff]
        %v288 = vld [vmem:[#allocation5 + $0x8] sm:$0xff]
        %v289 = vld [vmem:[#allocation5 + $0x10] sm:$0xff]
        %v290 = vld [vmem:[#allocation5 + $0x18] sm:$0xff]
        %v291 = vld [vmem:[#allocation5 + $0x20] sm:$0xff]
        %v292 = vld [vmem:[#allocation5 + $0x28] sm:$0xff]
        %v293 = vld [vmem:[#allocation5 + $0x30] sm:$0xff]
        %v294 = vld [vmem:[#allocation5 + $0x38] sm:$0xff]
        %v295 = vld [vmem:[#allocation5 + $0x40] sm:$0xff]
        %v296 = vld [vmem:[#allocation5 + $0x48] sm:$0xff]
        %v297 = vld [vmem:[#allocation5 + $0x50] sm:$0xff]
        %v298 = vld [vmem:[#allocation5 + $0x58] sm:$0xff]
        %v299 = vld [vmem:[#allocation5 + $0x60] sm:$0xff]
        %v300 = vld [vmem:[#allocation5 + $0x68] sm:$0xff]
        %v301 = vld [vmem:[#allocation5 + $0x70] sm:$0xff]
        %v302 = vld [vmem:[#allocation5 + $0x78] sm:$0xff]
        %v303 = vld [vmem:[#allocation5 + $0x80] sm:$0xff]
        %v304 = vld [vmem:[#allocation5 + $0x88] sm:$0xff]
        %v305 = vld [vmem:[#allocation5 + $0x90] sm:$0xff]
        %v306 = vld [vmem:[#allocation5 + $0x98] sm:$0xff]
        %v307 = vld [vmem:[#allocation5 + $0xa0] sm:$0xff]
        %v308 = vld [vmem:[#allocation5 + $0xa8] sm:$0xff]
        %v309 = vld [vmem:[#allocation5 + $0xb0] sm:$0xff]
        %v310 = vld [vmem:[#allocation5 + $0xb8] sm:$0xff]
        %v311 = vld [vmem:[#allocation5 + $0xc0] sm:$0xff]
        %v312 = vld [vmem:[#allocation5 + $0xc8] sm:$0xff]
        %v313 = vld [vmem:[#allocation5 + $0xd0] sm:$0xff]
        %v314 = vld [vmem:[#allocation5 + $0xd8] sm:$0xff]
        %v315 = vld [vmem:[#allocation5 + $0xe0] sm:$0xff]
        %v316 = vld [vmem:[#allocation5 + $0xe8] sm:$0xff]
        %v317 = vld [vmem:[#allocation5 + $0xf0] sm:$0xff]
        %v318 = vld [vmem:[#allocation5 + $0xf8] sm:$0xff]
        %319 = vmatprep.subr.mxu0 0.0
        %320 = vmatpush1.xpose.msra.mxu0 %v287
        %321 = vmatprep.subr.mxu0 0.0
        %322 = vmatpush1.xpose.msra.mxu0 %v288
        %323 = vmatprep.subr.mxu0 0.0
        %324 = vmatpush1.xpose.msra.mxu0 %v289
        %325 = vmatprep.subr.mxu0 0.0
        %326 = vmatpush1.xpose.msra.mxu0 %v290
        %327 = vmatprep.subr.mxu0 0.0
        %328 = vmatpush1.xpose.msra.mxu0 %v291
        %329 = vmatprep.subr.mxu0 0.0
        %330 = vmatpush1.xpose.msra.mxu0 %v292
        %331 = vmatprep.subr.mxu0 0.0
        %332 = vmatpush1.xpose.msra.mxu0 %v293
        %333 = vmatprep.subr.mxu0 0.0
        %334 = vmatpush1.xpose.msra.mxu0 %v294
        %335 = vmatprep.subr.mxu0 0.0
        %336 = vmatpush1.xpose.msra.mxu0 %v295
        %337 = vmatprep.subr.mxu0 0.0
        %338 = vmatpush1.xpose.msra.mxu0 %v296
        %339 = vmatprep.subr.mxu0 0.0
        %340 = vmatpush1.xpose.msra.mxu0 %v297
        %341 = vmatprep.subr.mxu0 0.0
        %342 = vmatpush1.xpose.msra.mxu0 %v298
        %343 = vmatprep.subr.mxu0 0.0
        %344 = vmatpush1.xpose.msra.mxu0 %v299
        %345 = vmatprep.subr.mxu0 0.0
        %346 = vmatpush1.xpose.msra.mxu0 %v300
        %347 = vmatprep.subr.mxu0 0.0
        %348 = vmatpush1.xpose.msra.mxu0 %v301
        %349 = vmatprep.subr.mxu0 0.0
        %350 = vmatpush1.xpose.msra.mxu0 %v302
        %351 = vmatprep.subr.mxu0 0.0
        %352 = vmatpush1.xpose.msra.mxu0 %v303
        %353 = vmatprep.subr.mxu0 0.0
        %354 = vmatpush1.xpose.msra.mxu0 %v304
        %355 = vmatprep.subr.mxu0 0.0
        %356 = vmatpush1.xpose.msra.mxu0 %v305
        %357 = vmatprep.subr.mxu0 0.0
        %358 = vmatpush1.xpose.msra.mxu0 %v306
        %359 = vmatprep.subr.mxu0 0.0
        %360 = vmatpush1.xpose.msra.mxu0 %v307
        %361 = vmatprep.subr.mxu0 0.0
        %362 = vmatpush1.xpose.msra.mxu0 %v308
        %363 = vmatprep.subr.mxu0 0.0
        %364 = vmatpush1.xpose.msra.mxu0 %v309
        %365 = vmatprep.subr.mxu0 0.0
        %366 = vmatpush1.xpose.msra.mxu0 %v310
        %367 = vmatprep.subr.mxu0 0.0
        %368 = vmatpush1.xpose.msra.mxu0 %v311
        %369 = vmatprep.subr.mxu0 0.0
        %370 = vmatpush1.xpose.msra.mxu0 %v312
        %371 = vmatprep.subr.mxu0 0.0
        %372 = vmatpush1.xpose.msra.mxu0 %v313
        %373 = vmatprep.subr.mxu0 0.0
        %374 = vmatpush1.xpose.msra.mxu0 %v314
        %375 = vmatprep.subr.mxu0 0.0
        %376 = vmatpush1.xpose.msra.mxu0 %v315
        %377 = vmatprep.subr.mxu0 0.0
        %378 = vmatpush1.xpose.msra.mxu0 %v316
        %379 = vmatprep.subr.mxu0 0.0
        %380 = vmatpush1.xpose.msra.mxu0 %v317
        %381 = vmatprep.subr.mxu0 0.0
        %382 = vmatpush1.xpose.msra.mxu0 %v318
        %383 = vmatprep.mubr.f32.mxu0 0.0
        %384 = vmatmul.mubr.f32.gmra.mrb[0].mxu0 %v255
        %v385 = vpop.f32.mrb[0].mxu0
        %v386 = vadd.f32 0.0, %v385
        %v387 = vpop.f32.mrb[0].mxu0
        %v388 = vadd.f32 0.0, %v387
        %389 = vmatprep.mubr.f32.mxu0 0.0
        %390 = vmatmul.mubr.f32.gmra.mrb[0].mxu0 %v256
        %v391 = vpop.f32.mrb[0].mxu0
        %v392 = vadd.f32 0.0, %v391
        %v393 = vpop.f32.mrb[0].mxu0
        %v394 = vadd.f32 0.0, %v393
        %395 = vmatprep.mubr.f32.mxu0 0.0
        %396 = vmatmul.mubr.f32.gmra.mrb[0].mxu0 %v257
        %v397 = vpop.f32.mrb[0].mxu0
        %v398 = vadd.f32 0.0, %v397
        %v399 = vpop.f32.mrb[0].mxu0
        %v400 = vadd.f32 0.0, %v399
        %401 = vmatprep.mubr.f32.mxu0 0.0
        %402 = vmatmul.mubr.f32.gmra.mrb[0].mxu0 %v258
        %v403 = vpop.f32.mrb[0].mxu0
        %v404 = vadd.f32 0.0, %v403
        %v405 = vpop.f32.mrb[0].mxu0
        %v406 = vadd.f32 0.0, %v405
        %407 = vmatprep.mubr.f32.mxu0 0.0
        %408 = vmatmul.mubr.f32.gmra.mrb[0].mxu0 %v259
        %v409 = vpop.f32.mrb[0].mxu0
        %v410 = vadd.f32 0.0, %v409
        %v411 = vpop.f32.mrb[0].mxu0
        %v412 = vadd.f32 0.0, %v411
        %413 = vmatprep.mubr.f32.mxu0 0.0
        %414 = vmatmul.mubr.f32.gmra.mrb[0].mxu0 %v260
        %v415 = vpop.f32.mrb[0].mxu0
        %v416 = vadd.f32 0.0, %v415
        %v417 = vpop.f32.mrb[0].mxu0
        %v418 = vadd.f32 0.0, %v417
        %419 = vmatprep.mubr.f32.mxu0 0.0
        %420 = vmatmul.mubr.f32.gmra.mrb[0].mxu0 %v261
        %v421 = vpop.f32.mrb[0].mxu0
        %v422 = vadd.f32 0.0, %v421
        %v423 = vpop.f32.mrb[0].mxu0
        %v424 = vadd.f32 0.0, %v423
        %425 = vmatprep.mubr.f32.mxu0 0.0
        %426 = vmatmul.mubr.f32.gmra.mrb[0].mxu0 %v262
        %v427 = vpop.f32.mrb[0].mxu0
        %v428 = vadd.f32 0.0, %v427
        %v429 = vpop.f32.mrb[0].mxu0
        %v430 = vadd.f32 0.0, %v429
        %431 = vmatprep.mubr.f32.mxu0 0.0
        %432 = vmatmul.mubr.f32.gmra.mrb[0].mxu0 %v263
        %v433 = vpop.f32.mrb[0].mxu0
        %v434 = vadd.f32 0.0, %v433
        %v435 = vpop.f32.mrb[0].mxu0
        %v436 = vadd.f32 0.0, %v435
        %437 = vmatprep.mubr.f32.mxu0 0.0
        %438 = vmatmul.mubr.f32.gmra.mrb[0].mxu0 %v264
        %v439 = vpop.f32.mrb[0].mxu0
        %v440 = vadd.f32 0.0, %v439
        %v441 = vpop.f32.mrb[0].mxu0
        %v442 = vadd.f32 0.0, %v441
        %443 = vmatprep.mubr.f32.mxu0 0.0
        %444 = vmatmul.mubr.f32.gmra.mrb[0].mxu0 %v265
        %v445 = vpop.f32.mrb[0].mxu0
        %v446 = vadd.f32 0.0, %v445
        %v447 = vpop.f32.mrb[0].mxu0
        %v448 = vadd.f32 0.0, %v447
        %449 = vmatprep.mubr.f32.mxu0 0.0
        %450 = vmatmul.mubr.f32.gmra.mrb[0].mxu0 %v266
        %v451 = vpop.f32.mrb[0].mxu0
        %v452 = vadd.f32 0.0, %v451
        %v453 = vpop.f32.mrb[0].mxu0
        %v454 = vadd.f32 0.0, %v453
        %455 = vmatprep.mubr.f32.mxu0 0.0
        %456 = vmatmul.mubr.f32.gmra.mrb[0].mxu0 %v267
        %v457 = vpop.f32.mrb[0].mxu0
        %v458 = vadd.f32 0.0, %v457
        %v459 = vpop.f32.mrb[0].mxu0
        %v460 = vadd.f32 0.0, %v459
        %461 = vmatprep.mubr.f32.mxu0 0.0
        %462 = vmatmul.mubr.f32.gmra.mrb[0].mxu0 %v268
        %v463 = vpop.f32.mrb[0].mxu0
        %v464 = vadd.f32 0.0, %v463
        %v465 = vpop.f32.mrb[0].mxu0
        %v466 = vadd.f32 0.0, %v465
        %467 = vmatprep.mubr.f32.mxu0 0.0
        %468 = vmatmul.mubr.f32.gmra.mrb[0].mxu0 %v269
        %v469 = vpop.f32.mrb[0].mxu0
        %v470 = vadd.f32 0.0, %v469
        %v471 = vpop.f32.mrb[0].mxu0
        %v472 = vadd.f32 0.0, %v471
        %473 = vmatprep.mubr.f32.mxu0 0.0
        %474 = vmatmul.mubr.f32.gmra.mrb[0].mxu0 %v270
        %v475 = vpop.f32.mrb[0].mxu0
        %v476 = vadd.f32 0.0, %v475
        %v477 = vpop.f32.mrb[0].mxu0
        %v478 = vadd.f32 0.0, %v477
        %479 = vmatprep.mubr.f32.mxu0 0.0
        %480 = vmatmul.mubr.f32.gmra.mrb[0].mxu0 %v271
        %v481 = vpop.f32.mrb[0].mxu0
        %v482 = vadd.f32 0.0, %v481
        %v483 = vpop.f32.mrb[0].mxu0
        %v484 = vadd.f32 0.0, %v483
        %485 = vmatprep.mubr.f32.mxu0 0.0
        %486 = vmatmul.mubr.f32.gmra.mrb[0].mxu0 %v272
        %v487 = vpop.f32.mrb[0].mxu0
        %v488 = vadd.f32 0.0, %v487
        %v489 = vpop.f32.mrb[0].mxu0
        %v490 = vadd.f32 0.0, %v489
        %491 = vmatprep.mubr.f32.mxu0 0.0
        %492 = vmatmul.mubr.f32.gmra.mrb[0].mxu0 %v273
        %v493 = vpop.f32.mrb[0].mxu0
        %v494 = vadd.f32 0.0, %v493
        %v495 = vpop.f32.mrb[0].mxu0
        %v496 = vadd.f32 0.0, %v495
        %497 = vmatprep.mubr.f32.mxu0 0.0
        %498 = vmatmul.mubr.f32.gmra.mrb[0].mxu0 %v274
        %v499 = vpop.f32.mrb[0].mxu0
        %v500 = vadd.f32 0.0, %v499
        %v501 = vpop.f32.mrb[0].mxu0
        %v502 = vadd.f32 0.0, %v501
        %503 = vmatprep.mubr.f32.mxu0 0.0
        %504 = vmatmul.mubr.f32.gmra.mrb[0].mxu0 %v275
        %v505 = vpop.f32.mrb[0].mxu0
        %v506 = vadd.f32 0.0, %v505
        %v507 = vpop.f32.mrb[0].mxu0
        %v508 = vadd.f32 0.0, %v507
        %509 = vmatprep.mubr.f32.mxu0 0.0
        %510 = vmatmul.mubr.f32.gmra.mrb[0].mxu0 %v276
        %v511 = vpop.f32.mrb[0].mxu0
        %v512 = vadd.f32 0.0, %v511
        %v513 = vpop.f32.mrb[0].mxu0
        %v514 = vadd.f32 0.0, %v513
        %515 = vmatprep.mubr.f32.mxu0 0.0
        %516 = vmatmul.mubr.f32.gmra.mrb[0].mxu0 %v277
        %v517 = vpop.f32.mrb[0].mxu0
        %v518 = vadd.f32 0.0, %v517
        %v519 = vpop.f32.mrb[0].mxu0
        %v520 = vadd.f32 0.0, %v519
        %521 = vmatprep.mubr.f32.mxu0 0.0
        %522 = vmatmul.mubr.f32.gmra.mrb[0].mxu0 %v278
        %v523 = vpop.f32.mrb[0].mxu0
        %v524 = vadd.f32 0.0, %v523
        %v525 = vpop.f32.mrb[0].mxu0
        %v526 = vadd.f32 0.0, %v525
        %527 = vmatprep.mubr.f32.mxu0 0.0
        %528 = vmatmul.mubr.f32.gmra.mrb[0].mxu0 %v279
        %v529 = vpop.f32.mrb[0].mxu0
        %v530 = vadd.f32 0.0, %v529
        %v531 = vpop.f32.mrb[0].mxu0
        %v532 = vadd.f32 0.0, %v531
        %533 = vmatprep.mubr.f32.mxu0 0.0
        %534 = vmatmul.mubr.f32.gmra.mrb[0].mxu0 %v280
        %v535 = vpop.f32.mrb[0].mxu0
        %v536 = vadd.f32 0.0, %v535
        %v537 = vpop.f32.mrb[0].mxu0
        %v538 = vadd.f32 0.0, %v537
        %539 = vmatprep.mubr.f32.mxu0 0.0
        %540 = vmatmul.mubr.f32.gmra.mrb[0].mxu0 %v281
        %v541 = vpop.f32.mrb[0].mxu0
        %v542 = vadd.f32 0.0, %v541
        %v543 = vpop.f32.mrb[0].mxu0
        %v544 = vadd.f32 0.0, %v543
        %545 = vmatprep.mubr.f32.mxu0 0.0
        %546 = vmatmul.mubr.f32.gmra.mrb[0].mxu0 %v282
        %v547 = vpop.f32.mrb[0].mxu0
        %v548 = vadd.f32 0.0, %v547
        %v549 = vpop.f32.mrb[0].mxu0
        %v550 = vadd.f32 0.0, %v549
        %551 = vmatprep.mubr.f32.mxu0 0.0
        %552 = vmatmul.mubr.f32.gmra.mrb[0].mxu0 %v283
        %v553 = vpop.f32.mrb[0].mxu0
        %v554 = vadd.f32 0.0, %v553
        %v555 = vpop.f32.mrb[0].mxu0
        %v556 = vadd.f32 0.0, %v555
        %557 = vmatprep.mubr.f32.mxu0 0.0
        %558 = vmatmul.mubr.f32.gmra.mrb[0].mxu0 %v284
        %v559 = vpop.f32.mrb[0].mxu0
        %v560 = vadd.f32 0.0, %v559
        %v561 = vpop.f32.mrb[0].mxu0
        %v562 = vadd.f32 0.0, %v561
        %563 = vmatprep.mubr.f32.mxu0 0.0
        %564 = vmatmul.mubr.f32.gmra.mrb[0].mxu0 %v285
        %v565 = vpop.f32.mrb[0].mxu0
        %v566 = vadd.f32 0.0, %v565
        %v567 = vpop.f32.mrb[0].mxu0
        %v568 = vadd.f32 0.0, %v567
        %569 = vmatprep.mubr.f32.mxu0 0.0
        %570 = vmatmul.mubr.f32.gmra.mrb[0].mxu0 %v286
        %v571 = vpop.f32.mrb[0].mxu0
        %v572 = vadd.f32 0.0, %v571
        %v573 = vpop.f32.mrb[0].mxu0
        %v574 = vadd.f32 0.0, %v573
        %575 = vdwg.mxu0
        %v576 = vmax.f32 %v386, %v388
        %577 = vmax.xlane.f32.xlu0 %v576
        %v578 = vpop.xlane.xlu0 %577
        %v579 = vmax.f32 %v392, %v394
        %580 = vmax.xlane.f32.xlu0 %v579
        %v581 = vpop.xlane.xlu0 %580
        %v582 = vmax.f32 %v398, %v400
        %583 = vmax.xlane.f32.xlu0 %v582
        %v584 = vpop.xlane.xlu0 %583
        %v585 = vmax.f32 %v404, %v406
        %586 = vmax.xlane.f32.xlu0 %v585
        %v587 = vpop.xlane.xlu0 %586
        %v588 = vmax.f32 %v410, %v412
        %589 = vmax.xlane.f32.xlu0 %v588
        %v590 = vpop.xlane.xlu0 %589
        %v591 = vmax.f32 %v416, %v418
        %592 = vmax.xlane.f32.xlu0 %v591
        %v593 = vpop.xlane.xlu0 %592
        %v594 = vmax.f32 %v422, %v424
        %595 = vmax.xlane.f32.xlu0 %v594
        %v596 = vpop.xlane.xlu0 %595
        %v597 = vmax.f32 %v428, %v430
        %598 = vmax.xlane.f32.xlu0 %v597
        %v599 = vpop.xlane.xlu0 %598
        %v600 = vmax.f32 %v434, %v436
        %601 = vmax.xlane.f32.xlu0 %v600
        %v602 = vpop.xlane.xlu0 %601
        %v603 = vmax.f32 %v440, %v442
        %604 = vmax.xlane.f32.xlu0 %v603
        %v605 = vpop.xlane.xlu0 %604
        %v606 = vmax.f32 %v446, %v448
        %607 = vmax.xlane.f32.xlu0 %v606
        %v608 = vpop.xlane.xlu0 %607
        %v609 = vmax.f32 %v452, %v454
        %610 = vmax.xlane.f32.xlu0 %v609
        %v611 = vpop.xlane.xlu0 %610
        %v612 = vmax.f32 %v458, %v460
        %613 = vmax.xlane.f32.xlu0 %v612
        %v614 = vpop.xlane.xlu0 %613
        %v615 = vmax.f32 %v464, %v466
        %616 = vmax.xlane.f32.xlu0 %v615
        %v617 = vpop.xlane.xlu0 %616
        %v618 = vmax.f32 %v470, %v472
        %619 = vmax.xlane.f32.xlu0 %v618
        %v620 = vpop.xlane.xlu0 %619
        %v621 = vmax.f32 %v476, %v478
        %622 = vmax.xlane.f32.xlu0 %v621
        %v623 = vpop.xlane.xlu0 %622
        %v624 = vmax.f32 %v482, %v484
        %625 = vmax.xlane.f32.xlu0 %v624
        %v626 = vpop.xlane.xlu0 %625
        %v627 = vmax.f32 %v488, %v490
        %628 = vmax.xlane.f32.xlu0 %v627
        %v629 = vpop.xlane.xlu0 %628
        %v630 = vmax.f32 %v494, %v496
        %631 = vmax.xlane.f32.xlu0 %v630
        %v632 = vpop.xlane.xlu0 %631
        %v633 = vmax.f32 %v500, %v502
        %634 = vmax.xlane.f32.xlu0 %v633
        %v635 = vpop.xlane.xlu0 %634
        %v636 = vmax.f32 %v506, %v508
        %637 = vmax.xlane.f32.xlu0 %v636
        %v638 = vpop.xlane.xlu0 %637
        %v639 = vmax.f32 %v512, %v514
        %640 = vmax.xlane.f32.xlu0 %v639
        %v641 = vpop.xlane.xlu0 %640
        %v642 = vmax.f32 %v518, %v520
        %643 = vmax.xlane.f32.xlu0 %v642
        %v644 = vpop.xlane.xlu0 %643
        %v645 = vmax.f32 %v524, %v526
        %646 = vmax.xlane.f32.xlu0 %v645
        %v647 = vpop.xlane.xlu0 %646
        %v648 = vmax.f32 %v530, %v532
        %649 = vmax.xlane.f32.xlu0 %v648
        %v650 = vpop.xlane.xlu0 %649
        %v651 = vmax.f32 %v536, %v538
        %652 = vmax.xlane.f32.xlu0 %v651
        %v653 = vpop.xlane.xlu0 %652
        %v654 = vmax.f32 %v542, %v544
        %655 = vmax.xlane.f32.xlu0 %v654
        %v656 = vpop.xlane.xlu0 %655
        %v657 = vmax.f32 %v548, %v550
        %658 = vmax.xlane.f32.xlu0 %v657
        %v659 = vpop.xlane.xlu0 %658
        %v660 = vmax.f32 %v554, %v556
        %661 = vmax.xlane.f32.xlu0 %v660
        %v662 = vpop.xlane.xlu0 %661
        %v663 = vmax.f32 %v560, %v562
        %664 = vmax.xlane.f32.xlu0 %v663
        %v665 = vpop.xlane.xlu0 %664
        %v666 = vmax.f32 %v566, %v568
        %667 = vmax.xlane.f32.xlu0 %v666
        %v668 = vpop.xlane.xlu0 %667
        %v669 = vmax.f32 %v572, %v574
        %670 = vmax.xlane.f32.xlu0 %v669
        %v671 = vpop.xlane.xlu0 %670
        %vm672 = vcmp.ge.f32.partialorder %v386, %v578
        %vm673 = vcmp.ge.f32.partialorder %v388, %v578
        %vm674 = vcmp.ge.f32.partialorder %v392, %v581
        %vm675 = vcmp.ge.f32.partialorder %v394, %v581
        %vm676 = vcmp.ge.f32.partialorder %v398, %v584
        %vm677 = vcmp.ge.f32.partialorder %v400, %v584
        %vm678 = vcmp.ge.f32.partialorder %v404, %v587
        %vm679 = vcmp.ge.f32.partialorder %v406, %v587
        %vm680 = vcmp.ge.f32.partialorder %v410, %v590
        %vm681 = vcmp.ge.f32.partialorder %v412, %v590
        %vm682 = vcmp.ge.f32.partialorder %v416, %v593
        %vm683 = vcmp.ge.f32.partialorder %v418, %v593
        %vm684 = vcmp.ge.f32.partialorder %v422, %v596
        %vm685 = vcmp.ge.f32.partialorder %v424, %v596
        %vm686 = vcmp.ge.f32.partialorder %v428, %v599
        %vm687 = vcmp.ge.f32.partialorder %v430, %v599
        %vm688 = vcmp.ge.f32.partialorder %v434, %v602
        %vm689 = vcmp.ge.f32.partialorder %v436, %v602
        %vm690 = vcmp.ge.f32.partialorder %v440, %v605
        %vm691 = vcmp.ge.f32.partialorder %v442, %v605
        %vm692 = vcmp.ge.f32.partialorder %v446, %v608
        %vm693 = vcmp.ge.f32.partialorder %v448, %v608
        %vm694 = vcmp.ge.f32.partialorder %v452, %v611
        %vm695 = vcmp.ge.f32.partialorder %v454, %v611
        %vm696 = vcmp.ge.f32.partialorder %v458, %v614
        %vm697 = vcmp.ge.f32.partialorder %v460, %v614
        %vm698 = vcmp.ge.f32.partialorder %v464, %v617
        %vm699 = vcmp.ge.f32.partialorder %v466, %v617
        %vm700 = vcmp.ge.f32.partialorder %v470, %v620
        %vm701 = vcmp.ge.f32.partialorder %v472, %v620
        %vm702 = vcmp.ge.f32.partialorder %v476, %v623
        %vm703 = vcmp.ge.f32.partialorder %v478, %v623
        %vm704 = vcmp.ge.f32.partialorder %v482, %v626
        %vm705 = vcmp.ge.f32.partialorder %v484, %v626
        %vm706 = vcmp.ge.f32.partialorder %v488, %v629
        %vm707 = vcmp.ge.f32.partialorder %v490, %v629
        %vm708 = vcmp.ge.f32.partialorder %v494, %v632
        %vm709 = vcmp.ge.f32.partialorder %v496, %v632
        %vm710 = vcmp.ge.f32.partialorder %v500, %v635
        %vm711 = vcmp.ge.f32.partialorder %v502, %v635
        %vm712 = vcmp.ge.f32.partialorder %v506, %v638
        %vm713 = vcmp.ge.f32.partialorder %v508, %v638
        %vm714 = vcmp.ge.f32.partialorder %v512, %v641
        %vm715 = vcmp.ge.f32.partialorder %v514, %v641
        %vm716 = vcmp.ge.f32.partialorder %v518, %v644
        %vm717 = vcmp.ge.f32.partialorder %v520, %v644
        %vm718 = vcmp.ge.f32.partialorder %v524, %v647
        %vm719 = vcmp.ge.f32.partialorder %v526, %v647
        %vm720 = vcmp.ge.f32.partialorder %v530, %v650
        %vm721 = vcmp.ge.f32.partialorder %v532, %v650
        %vm722 = vcmp.ge.f32.partialorder %v536, %v653
        %vm723 = vcmp.ge.f32.partialorder %v538, %v653
        %vm724 = vcmp.ge.f32.partialorder %v542, %v656
        %vm725 = vcmp.ge.f32.partialorder %v544, %v656
        %vm726 = vcmp.ge.f32.partialorder %v548, %v659
        %vm727 = vcmp.ge.f32.partialorder %v550, %v659
        %vm728 = vcmp.ge.f32.partialorder %v554, %v662
        %vm729 = vcmp.ge.f32.partialorder %v556, %v662
        %vm730 = vcmp.ge.f32.partialorder %v560, %v665
        %vm731 = vcmp.ge.f32.partialorder %v562, %v665
        %vm732 = vcmp.ge.f32.partialorder %v566, %v668
        %vm733 = vcmp.ge.f32.partialorder %v568, %v668
        %vm734 = vcmp.ge.f32.partialorder %v572, %v671
        %vm735 = vcmp.ge.f32.partialorder %v574, %v671
        %v736 = vsel %vm672, -3.4028235e+38, %v386
        %v737 = vsel %vm673, -3.4028235e+38, %v388
        %v738 = vsel %vm674, -3.4028235e+38, %v392
        %v739 = vsel %vm675, -3.4028235e+38, %v394
        %v740 = vsel %vm676, -3.4028235e+38, %v398
        %v741 = vsel %vm677, -3.4028235e+38, %v400
        %v742 = vsel %vm678, -3.4028235e+38, %v404
        %v743 = vsel %vm679, -3.4028235e+38, %v406
        %v744 = vsel %vm680, -3.4028235e+38, %v410
        %v745 = vsel %vm681, -3.4028235e+38, %v412
        %v746 = vsel %vm682, -3.4028235e+38, %v416
        %v747 = vsel %vm683, -3.4028235e+38, %v418
        %v748 = vsel %vm684, -3.4028235e+38, %v422
        %v749 = vsel %vm685, -3.4028235e+38, %v424
        %v750 = vsel %vm686, -3.4028235e+38, %v428
        %v751 = vsel %vm687, -3.4028235e+38, %v430
        %v752 = vsel %vm688, -3.4028235e+38, %v434
        %v753 = vsel %vm689, -3.4028235e+38, %v436
        %v754 = vsel %vm690, -3.4028235e+38, %v440
        %v755 = vsel %vm691, -3.4028235e+38, %v442
        %v756 = vsel %vm692, -3.4028235e+38, %v446
        %v757 = vsel %vm693, -3.4028235e+38, %v448
        %v758 = vsel %vm694, -3.4028235e+38, %v452
        %v759 = vsel %vm695, -3.4028235e+38, %v454
        %v760 = vsel %vm696, -3.4028235e+38, %v458
        %v761 = vsel %vm697, -3.4028235e+38, %v460
        %v762 = vsel %vm698, -3.4028235e+38, %v464
        %v763 = vsel %vm699, -3.4028235e+38, %v466
        %v764 = vsel %vm700, -3.4028235e+38, %v470
        %v765 = vsel %vm701, -3.4028235e+38, %v472
        %v766 = vsel %vm702, -3.4028235e+38, %v476
        %v767 = vsel %vm703, -3.4028235e+38, %v478
        %v768 = vsel %vm704, -3.4028235e+38, %v482
        %v769 = vsel %vm705, -3.4028235e+38, %v484
        %v770 = vsel %vm706, -3.4028235e+38, %v488
        %v771 = vsel %vm707, -3.4028235e+38, %v490
        %v772 = vsel %vm708, -3.4028235e+38, %v494
        %v773 = vsel %vm709, -3.4028235e+38, %v496
        %v774 = vsel %vm710, -3.4028235e+38, %v500
        %v775 = vsel %vm711, -3.4028235e+38, %v502
        %v776 = vsel %vm712, -3.4028235e+38, %v506
        %v777 = vsel %vm713, -3.4028235e+38, %v508
        %v778 = vsel %vm714, -3.4028235e+38, %v512
        %v779 = vsel %vm715, -3.4028235e+38, %v514
        %v780 = vsel %vm716, -3.4028235e+38, %v518
        %v781 = vsel %vm717, -3.4028235e+38, %v520
        %v782 = vsel %vm718, -3.4028235e+38, %v524
        %v783 = vsel %vm719, -3.4028235e+38, %v526
        %v784 = vsel %vm720, -3.4028235e+38, %v530
        %v785 = vsel %vm721, -3.4028235e+38, %v532
        %v786 = vsel %vm722, -3.4028235e+38, %v536
        %v787 = vsel %vm723, -3.4028235e+38, %v538
        %v788 = vsel %vm724, -3.4028235e+38, %v542
        %v789 = vsel %vm725, -3.4028235e+38, %v544
        %v790 = vsel %vm726, -3.4028235e+38, %v548
        %v791 = vsel %vm727, -3.4028235e+38, %v550
        %v792 = vsel %vm728, -3.4028235e+38, %v554
        %v793 = vsel %vm729, -3.4028235e+38, %v556
        %v794 = vsel %vm730, -3.4028235e+38, %v560
        %v795 = vsel %vm731, -3.4028235e+38, %v562
        %v796 = vsel %vm732, -3.4028235e+38, %v566
        %v797 = vsel %vm733, -3.4028235e+38, %v568
        %v798 = vsel %vm734, -3.4028235e+38, %v572
        %v799 = vsel %vm735, -3.4028235e+38, %v574
        %v800 = vmax.f32 %v736, %v737
        %801 = vmax.xlane.f32.xlu0 %v800
        %v802 = vpop.xlane.xlu0 %801
        %v803 = vmax.f32 %v738, %v739
        %804 = vmax.xlane.f32.xlu0 %v803
        %v805 = vpop.xlane.xlu0 %804
        %v806 = vmax.f32 %v740, %v741
        %807 = vmax.xlane.f32.xlu0 %v806
        %v808 = vpop.xlane.xlu0 %807
        %v809 = vmax.f32 %v742, %v743
        %810 = vmax.xlane.f32.xlu0 %v809
        %v811 = vpop.xlane.xlu0 %810
        %v812 = vmax.f32 %v744, %v745
        %813 = vmax.xlane.f32.xlu0 %v812
        %v814 = vpop.xlane.xlu0 %813
        %v815 = vmax.f32 %v746, %v747
        %816 = vmax.xlane.f32.xlu0 %v815
        %v817 = vpop.xlane.xlu0 %816
        %v818 = vmax.f32 %v748, %v749
        %819 = vmax.xlane.f32.xlu0 %v818
        %v820 = vpop.xlane.xlu0 %819
        %v821 = vmax.f32 %v750, %v751
        %822 = vmax.xlane.f32.xlu0 %v821
        %v823 = vpop.xlane.xlu0 %822
        %v824 = vmax.f32 %v752, %v753
        %825 = vmax.xlane.f32.xlu0 %v824
        %v826 = vpop.xlane.xlu0 %825
        %v827 = vmax.f32 %v754, %v755
        %828 = vmax.xlane.f32.xlu0 %v827
        %v829 = vpop.xlane.xlu0 %828
        %v830 = vmax.f32 %v756, %v757
        %831 = vmax.xlane.f32.xlu0 %v830
        %v832 = vpop.xlane.xlu0 %831
        %v833 = vmax.f32 %v758, %v759
        %834 = vmax.xlane.f32.xlu0 %v833
        %v835 = vpop.xlane.xlu0 %834
        %v836 = vmax.f32 %v760, %v761
        %837 = vmax.xlane.f32.xlu0 %v836
        %v838 = vpop.xlane.xlu0 %837
        %v839 = vmax.f32 %v762, %v763
        %840 = vmax.xlane.f32.xlu0 %v839
        %v841 = vpop.xlane.xlu0 %840
        %v842 = vmax.f32 %v764, %v765
        %843 = vmax.xlane.f32.xlu0 %v842
        %v844 = vpop.xlane.xlu0 %843
        %v845 = vmax.f32 %v766, %v767
        %846 = vmax.xlane.f32.xlu0 %v845
        %v847 = vpop.xlane.xlu0 %846
        %v848 = vmax.f32 %v768, %v769
        %849 = vmax.xlane.f32.xlu0 %v848
        %v850 = vpop.xlane.xlu0 %849
        %v851 = vmax.f32 %v770, %v771
        %852 = vmax.xlane.f32.xlu0 %v851
        %v853 = vpop.xlane.xlu0 %852
        %v854 = vmax.f32 %v772, %v773
        %855 = vmax.xlane.f32.xlu0 %v854
        %v856 = vpop.xlane.xlu0 %855
        %v857 = vmax.f32 %v774, %v775
        %858 = vmax.xlane.f32.xlu0 %v857
        %v859 = vpop.xlane.xlu0 %858
        %v860 = vmax.f32 %v776, %v777
        %861 = vmax.xlane.f32.xlu0 %v860
        %v862 = vpop.xlane.xlu0 %861
        %v863 = vmax.f32 %v778, %v779
        %864 = vmax.xlane.f32.xlu0 %v863
        %v865 = vpop.xlane.xlu0 %864
        %v866 = vmax.f32 %v780, %v781
        %867 = vmax.xlane.f32.xlu0 %v866
        %v868 = vpop.xlane.xlu0 %867
        %v869 = vmax.f32 %v782, %v783
        %870 = vmax.xlane.f32.xlu0 %v869
        %v871 = vpop.xlane.xlu0 %870
        %v872 = vmax.f32 %v784, %v785
        %873 = vmax.xlane.f32.xlu0 %v872
        %v874 = vpop.xlane.xlu0 %873
        %v875 = vmax.f32 %v786, %v787
        %876 = vmax.xlane.f32.xlu0 %v875
        %v877 = vpop.xlane.xlu0 %876
        %v878 = vmax.f32 %v788, %v789
        %879 = vmax.xlane.f32.xlu0 %v878
        %v880 = vpop.xlane.xlu0 %879
        %v881 = vmax.f32 %v790, %v791
        %882 = vmax.xlane.f32.xlu0 %v881
        %v883 = vpop.xlane.xlu0 %882
        %v884 = vmax.f32 %v792, %v793
        %885 = vmax.xlane.f32.xlu0 %v884
        %v886 = vpop.xlane.xlu0 %885
        %v887 = vmax.f32 %v794, %v795
        %888 = vmax.xlane.f32.xlu0 %v887
        %v889 = vpop.xlane.xlu0 %888
        %v890 = vmax.f32 %v796, %v797
        %891 = vmax.xlane.f32.xlu0 %v890
        %v892 = vpop.xlane.xlu0 %891
        %v893 = vmax.f32 %v798, %v799
        %894 = vmax.xlane.f32.xlu0 %v893
        %v895 = vpop.xlane.xlu0 %894
        %vm896 = vcmp.ge.f32.partialorder %v386, %v802
        %vm897 = vcmp.ge.f32.partialorder %v388, %v802
        %vm898 = vcmp.ge.f32.partialorder %v392, %v805
        %vm899 = vcmp.ge.f32.partialorder %v394, %v805
        %vm900 = vcmp.ge.f32.partialorder %v398, %v808
        %vm901 = vcmp.ge.f32.partialorder %v400, %v808
        %vm902 = vcmp.ge.f32.partialorder %v404, %v811
        %vm903 = vcmp.ge.f32.partialorder %v406, %v811
        %vm904 = vcmp.ge.f32.partialorder %v410, %v814
        %vm905 = vcmp.ge.f32.partialorder %v412, %v814
        %vm906 = vcmp.ge.f32.partialorder %v416, %v817
        %vm907 = vcmp.ge.f32.partialorder %v418, %v817
        %vm908 = vcmp.ge.f32.partialorder %v422, %v820
        %vm909 = vcmp.ge.f32.partialorder %v424, %v820
        %vm910 = vcmp.ge.f32.partialorder %v428, %v823
        %vm911 = vcmp.ge.f32.partialorder %v430, %v823
        %vm912 = vcmp.ge.f32.partialorder %v434, %v826
        %vm913 = vcmp.ge.f32.partialorder %v436, %v826
        %vm914 = vcmp.ge.f32.partialorder %v440, %v829
        %vm915 = vcmp.ge.f32.partialorder %v442, %v829
        %vm916 = vcmp.ge.f32.partialorder %v446, %v832
        %vm917 = vcmp.ge.f32.partialorder %v448, %v832
        %vm918 = vcmp.ge.f32.partialorder %v452, %v835
        %vm919 = vcmp.ge.f32.partialorder %v454, %v835
        %vm920 = vcmp.ge.f32.partialorder %v458, %v838
        %vm921 = vcmp.ge.f32.partialorder %v460, %v838
        %vm922 = vcmp.ge.f32.partialorder %v464, %v841
        %vm923 = vcmp.ge.f32.partialorder %v466, %v841
        %vm924 = vcmp.ge.f32.partialorder %v470, %v844
        %vm925 = vcmp.ge.f32.partialorder %v472, %v844
        %vm926 = vcmp.ge.f32.partialorder %v476, %v847
        %vm927 = vcmp.ge.f32.partialorder %v478, %v847
        %vm928 = vcmp.ge.f32.partialorder %v482, %v850
        %vm929 = vcmp.ge.f32.partialorder %v484, %v850
        %vm930 = vcmp.ge.f32.partialorder %v488, %v853
        %vm931 = vcmp.ge.f32.partialorder %v490, %v853
        %vm932 = vcmp.ge.f32.partialorder %v494, %v856
        %vm933 = vcmp.ge.f32.partialorder %v496, %v856
        %vm934 = vcmp.ge.f32.partialorder %v500, %v859
        %vm935 = vcmp.ge.f32.partialorder %v502, %v859
        %vm936 = vcmp.ge.f32.partialorder %v506, %v862
        %vm937 = vcmp.ge.f32.partialorder %v508, %v862
        %vm938 = vcmp.ge.f32.partialorder %v512, %v865
        %vm939 = vcmp.ge.f32.partialorder %v514, %v865
        %vm940 = vcmp.ge.f32.partialorder %v518, %v868
        %vm941 = vcmp.ge.f32.partialorder %v520, %v868
        %vm942 = vcmp.ge.f32.partialorder %v524, %v871
        %vm943 = vcmp.ge.f32.partialorder %v526, %v871
        %vm944 = vcmp.ge.f32.partialorder %v530, %v874
        %vm945 = vcmp.ge.f32.partialorder %v532, %v874
        %vm946 = vcmp.ge.f32.partialorder %v536, %v877
        %vm947 = vcmp.ge.f32.partialorder %v538, %v877
        %vm948 = vcmp.ge.f32.partialorder %v542, %v880
        %vm949 = vcmp.ge.f32.partialorder %v544, %v880
        %vm950 = vcmp.ge.f32.partialorder %v548, %v883
        %vm951 = vcmp.ge.f32.partialorder %v550, %v883
        %vm952 = vcmp.ge.f32.partialorder %v554, %v886
        %vm953 = vcmp.ge.f32.partialorder %v556, %v886
        %vm954 = vcmp.ge.f32.partialorder %v560, %v889
        %vm955 = vcmp.ge.f32.partialorder %v562, %v889
        %vm956 = vcmp.ge.f32.partialorder %v566, %v892
        %vm957 = vcmp.ge.f32.partialorder %v568, %v892
        %vm958 = vcmp.ge.f32.partialorder %v572, %v895
        %vm959 = vcmp.ge.f32.partialorder %v574, %v895
        %v960 = vsel %vm896, -3.4028235e+38, %v386
        %v961 = vsel %vm897, -3.4028235e+38, %v388
        %v962 = vsel %vm898, -3.4028235e+38, %v392
        %v963 = vsel %vm899, -3.4028235e+38, %v394
        %v964 = vsel %vm900, -3.4028235e+38, %v398
        %v965 = vsel %vm901, -3.4028235e+38, %v400
        %v966 = vsel %vm902, -3.4028235e+38, %v404
        %v967 = vsel %vm903, -3.4028235e+38, %v406
        %v968 = vsel %vm904, -3.4028235e+38, %v410
        %v969 = vsel %vm905, -3.4028235e+38, %v412
        %v970 = vsel %vm906, -3.4028235e+38, %v416
        %v971 = vsel %vm907, -3.4028235e+38, %v418
        %v972 = vsel %vm908, -3.4028235e+38, %v422
        %v973 = vsel %vm909, -3.4028235e+38, %v424
        %v974 = vsel %vm910, -3.4028235e+38, %v428
        %v975 = vsel %vm911, -3.4028235e+38, %v430
        %v976 = vsel %vm912, -3.4028235e+38, %v434
        %v977 = vsel %vm913, -3.4028235e+38, %v436
        %v978 = vsel %vm914, -3.4028235e+38, %v440
        %v979 = vsel %vm915, -3.4028235e+38, %v442
        %v980 = vsel %vm916, -3.4028235e+38, %v446
        %v981 = vsel %vm917, -3.4028235e+38, %v448
        %v982 = vsel %vm918, -3.4028235e+38, %v452
        %v983 = vsel %vm919, -3.4028235e+38, %v454
        %v984 = vsel %vm920, -3.4028235e+38, %v458
        %v985 = vsel %vm921, -3.4028235e+38, %v460
        %v986 = vsel %vm922, -3.4028235e+38, %v464
        %v987 = vsel %vm923, -3.4028235e+38, %v466
        %v988 = vsel %vm924, -3.4028235e+38, %v470
        %v989 = vsel %vm925, -3.4028235e+38, %v472
        %v990 = vsel %vm926, -3.4028235e+38, %v476
        %v991 = vsel %vm927, -3.4028235e+38, %v478
        %v992 = vsel %vm928, -3.4028235e+38, %v482
        %v993 = vsel %vm929, -3.4028235e+38, %v484
        %v994 = vsel %vm930, -3.4028235e+38, %v488
        %v995 = vsel %vm931, -3.4028235e+38, %v490
        %v996 = vsel %vm932, -3.4028235e+38, %v494
        %v997 = vsel %vm933, -3.4028235e+38, %v496
        %v998 = vsel %vm934, -3.4028235e+38, %v500
        %v999 = vsel %vm935, -3.4028235e+38, %v502
        %v1000 = vsel %vm936, -3.4028235e+38, %v506
        %v1001 = vsel %vm937, -3.4028235e+38, %v508
        %v1002 = vsel %vm938, -3.4028235e+38, %v512
        %v1003 = vsel %vm939, -3.4028235e+38, %v514
        %v1004 = vsel %vm940, -3.4028235e+38, %v518
        %v1005 = vsel %vm941, -3.4028235e+38, %v520
        %v1006 = vsel %vm942, -3.4028235e+38, %v524
        %v1007 = vsel %vm943, -3.4028235e+38, %v526
        %v1008 = vsel %vm944, -3.4028235e+38, %v530
        %v1009 = vsel %vm945, -3.4028235e+38, %v532
        %v1010 = vsel %vm946, -3.4028235e+38, %v536
        %v1011 = vsel %vm947, -3.4028235e+38, %v538
        %v1012 = vsel %vm948, -3.4028235e+38, %v542
        %v1013 = vsel %vm949, -3.4028235e+38, %v544
        %v1014 = vsel %vm950, -3.4028235e+38, %v548
        %v1015 = vsel %vm951, -3.4028235e+38, %v550
        %v1016 = vsel %vm952, -3.4028235e+38, %v554
        %v1017 = vsel %vm953, -3.4028235e+38, %v556
        %v1018 = vsel %vm954, -3.4028235e+38, %v560
        %v1019 = vsel %vm955, -3.4028235e+38, %v562
        %v1020 = vsel %vm956, -3.4028235e+38, %v566
        %v1021 = vsel %vm957, -3.4028235e+38, %v568
        %v1022 = vsel %vm958, -3.4028235e+38, %v572
        %v1023 = vsel %vm959, -3.4028235e+38, %v574
        %v1024 = vmax.f32 %v960, %v961
        %1025 = vmax.xlane.f32.xlu0 %v1024
        %v1026 = vpop.xlane.xlu0 %1025
        %v1027 = vmax.f32 %v962, %v963
        %1028 = vmax.xlane.f32.xlu0 %v1027
        %v1029 = vpop.xlane.xlu0 %1028
        %v1030 = vmax.f32 %v964, %v965
        %1031 = vmax.xlane.f32.xlu0 %v1030
        %v1032 = vpop.xlane.xlu0 %1031
        %v1033 = vmax.f32 %v966, %v967
        %1034 = vmax.xlane.f32.xlu0 %v1033
        %v1035 = vpop.xlane.xlu0 %1034
        %v1036 = vmax.f32 %v968, %v969
        %1037 = vmax.xlane.f32.xlu0 %v1036
        %v1038 = vpop.xlane.xlu0 %1037
        %v1039 = vmax.f32 %v970, %v971
        %1040 = vmax.xlane.f32.xlu0 %v1039
        %v1041 = vpop.xlane.xlu0 %1040
        %v1042 = vmax.f32 %v972, %v973
        %1043 = vmax.xlane.f32.xlu0 %v1042
        %v1044 = vpop.xlane.xlu0 %1043
        %v1045 = vmax.f32 %v974, %v975
        %1046 = vmax.xlane.f32.xlu0 %v1045
        %v1047 = vpop.xlane.xlu0 %1046
        %v1048 = vmax.f32 %v976, %v977
        %1049 = vmax.xlane.f32.xlu0 %v1048
        %v1050 = vpop.xlane.xlu0 %1049
        %v1051 = vmax.f32 %v978, %v979
        %1052 = vmax.xlane.f32.xlu0 %v1051
        %v1053 = vpop.xlane.xlu0 %1052
        %v1054 = vmax.f32 %v980, %v981
        %1055 = vmax.xlane.f32.xlu0 %v1054
        %v1056 = vpop.xlane.xlu0 %1055
        %v1057 = vmax.f32 %v982, %v983
        %1058 = vmax.xlane.f32.xlu0 %v1057
        %v1059 = vpop.xlane.xlu0 %1058
        %v1060 = vmax.f32 %v984, %v985
        %1061 = vmax.xlane.f32.xlu0 %v1060
        %v1062 = vpop.xlane.xlu0 %1061
        %v1063 = vmax.f32 %v986, %v987
        %1064 = vmax.xlane.f32.xlu0 %v1063
        %v1065 = vpop.xlane.xlu0 %1064
        %v1066 = vmax.f32 %v988, %v989
        %1067 = vmax.xlane.f32.xlu0 %v1066
        %v1068 = vpop.xlane.xlu0 %1067
        %v1069 = vmax.f32 %v990, %v991
        %1070 = vmax.xlane.f32.xlu0 %v1069
        %v1071 = vpop.xlane.xlu0 %1070
        %v1072 = vmax.f32 %v992, %v993
        %1073 = vmax.xlane.f32.xlu0 %v1072
        %v1074 = vpop.xlane.xlu0 %1073
        %v1075 = vmax.f32 %v994, %v995
        %1076 = vmax.xlane.f32.xlu0 %v1075
        %v1077 = vpop.xlane.xlu0 %1076
        %v1078 = vmax.f32 %v996, %v997
        %1079 = vmax.xlane.f32.xlu0 %v1078
        %v1080 = vpop.xlane.xlu0 %1079
        %v1081 = vmax.f32 %v998, %v999
        %1082 = vmax.xlane.f32.xlu0 %v1081
        %v1083 = vpop.xlane.xlu0 %1082
        %v1084 = vmax.f32 %v1000, %v1001
        %1085 = vmax.xlane.f32.xlu0 %v1084
        %v1086 = vpop.xlane.xlu0 %1085
        %v1087 = vmax.f32 %v1002, %v1003
        %1088 = vmax.xlane.f32.xlu0 %v1087
        %v1089 = vpop.xlane.xlu0 %1088
        %v1090 = vmax.f32 %v1004, %v1005
        %1091 = vmax.xlane.f32.xlu0 %v1090
        %v1092 = vpop.xlane.xlu0 %1091
        %v1093 = vmax.f32 %v1006, %v1007
        %1094 = vmax.xlane.f32.xlu0 %v1093
        %v1095 = vpop.xlane.xlu0 %1094
        %v1096 = vmax.f32 %v1008, %v1009
        %1097 = vmax.xlane.f32.xlu0 %v1096
        %v1098 = vpop.xlane.xlu0 %1097
        %v1099 = vmax.f32 %v1010, %v1011
        %1100 = vmax.xlane.f32.xlu0 %v1099
        %v1101 = vpop.xlane.xlu0 %1100
        %v1102 = vmax.f32 %v1012, %v1013
        %1103 = vmax.xlane.f32.xlu0 %v1102
        %v1104 = vpop.xlane.xlu0 %1103
        %v1105 = vmax.f32 %v1014, %v1015
        %1106 = vmax.xlane.f32.xlu0 %v1105
        %v1107 = vpop.xlane.xlu0 %1106
        %v1108 = vmax.f32 %v1016, %v1017
        %1109 = vmax.xlane.f32.xlu0 %v1108
        %v1110 = vpop.xlane.xlu0 %1109
        %v1111 = vmax.f32 %v1018, %v1019
        %1112 = vmax.xlane.f32.xlu0 %v1111
        %v1113 = vpop.xlane.xlu0 %1112
        %v1114 = vmax.f32 %v1020, %v1021
        %1115 = vmax.xlane.f32.xlu0 %v1114
        %v1116 = vpop.xlane.xlu0 %1115
        %v1117 = vmax.f32 %v1022, %v1023
        %1118 = vmax.xlane.f32.xlu0 %v1117
        %v1119 = vpop.xlane.xlu0 %1118
        %vm1120 = vcmp.ge.f32.partialorder %v386, %v1026
        %vm1121 = vcmp.ge.f32.partialorder %v388, %v1026
        %vm1122 = vcmp.ge.f32.partialorder %v392, %v1029
        %vm1123 = vcmp.ge.f32.partialorder %v394, %v1029
        %vm1124 = vcmp.ge.f32.partialorder %v398, %v1032
        %vm1125 = vcmp.ge.f32.partialorder %v400, %v1032
        %vm1126 = vcmp.ge.f32.partialorder %v404, %v1035
        %vm1127 = vcmp.ge.f32.partialorder %v406, %v1035
        %vm1128 = vcmp.ge.f32.partialorder %v410, %v1038
        %vm1129 = vcmp.ge.f32.partialorder %v412, %v1038
        %vm1130 = vcmp.ge.f32.partialorder %v416, %v1041
        %vm1131 = vcmp.ge.f32.partialorder %v418, %v1041
        %vm1132 = vcmp.ge.f32.partialorder %v422, %v1044
        %vm1133 = vcmp.ge.f32.partialorder %v424, %v1044
        %vm1134 = vcmp.ge.f32.partialorder %v428, %v1047
        %vm1135 = vcmp.ge.f32.partialorder %v430, %v1047
        %vm1136 = vcmp.ge.f32.partialorder %v434, %v1050
        %vm1137 = vcmp.ge.f32.partialorder %v436, %v1050
        %vm1138 = vcmp.ge.f32.partialorder %v440, %v1053
        %vm1139 = vcmp.ge.f32.partialorder %v442, %v1053
        %vm1140 = vcmp.ge.f32.partialorder %v446, %v1056
        %vm1141 = vcmp.ge.f32.partialorder %v448, %v1056
        %vm1142 = vcmp.ge.f32.partialorder %v452, %v1059
        %vm1143 = vcmp.ge.f32.partialorder %v454, %v1059
        %vm1144 = vcmp.ge.f32.partialorder %v458, %v1062
        %vm1145 = vcmp.ge.f32.partialorder %v460, %v1062
        %vm1146 = vcmp.ge.f32.partialorder %v464, %v1065
        %vm1147 = vcmp.ge.f32.partialorder %v466, %v1065
        %vm1148 = vcmp.ge.f32.partialorder %v470, %v1068
        %vm1149 = vcmp.ge.f32.partialorder %v472, %v1068
        %vm1150 = vcmp.ge.f32.partialorder %v476, %v1071
        %vm1151 = vcmp.ge.f32.partialorder %v478, %v1071
        %vm1152 = vcmp.ge.f32.partialorder %v482, %v1074
        %vm1153 = vcmp.ge.f32.partialorder %v484, %v1074
        %vm1154 = vcmp.ge.f32.partialorder %v488, %v1077
        %vm1155 = vcmp.ge.f32.partialorder %v490, %v1077
        %vm1156 = vcmp.ge.f32.partialorder %v494, %v1080
        %vm1157 = vcmp.ge.f32.partialorder %v496, %v1080
        %vm1158 = vcmp.ge.f32.partialorder %v500, %v1083
        %vm1159 = vcmp.ge.f32.partialorder %v502, %v1083
        %vm1160 = vcmp.ge.f32.partialorder %v506, %v1086
        %vm1161 = vcmp.ge.f32.partialorder %v508, %v1086
        %vm1162 = vcmp.ge.f32.partialorder %v512, %v1089
        %vm1163 = vcmp.ge.f32.partialorder %v514, %v1089
        %vm1164 = vcmp.ge.f32.partialorder %v518, %v1092
        %vm1165 = vcmp.ge.f32.partialorder %v520, %v1092
        %vm1166 = vcmp.ge.f32.partialorder %v524, %v1095
        %vm1167 = vcmp.ge.f32.partialorder %v526, %v1095
        %vm1168 = vcmp.ge.f32.partialorder %v530, %v1098
        %vm1169 = vcmp.ge.f32.partialorder %v532, %v1098
        %vm1170 = vcmp.ge.f32.partialorder %v536, %v1101
        %vm1171 = vcmp.ge.f32.partialorder %v538, %v1101
        %vm1172 = vcmp.ge.f32.partialorder %v542, %v1104
        %vm1173 = vcmp.ge.f32.partialorder %v544, %v1104
        %vm1174 = vcmp.ge.f32.partialorder %v548, %v1107
        %vm1175 = vcmp.ge.f32.partialorder %v550, %v1107
        %vm1176 = vcmp.ge.f32.partialorder %v554, %v1110
        %vm1177 = vcmp.ge.f32.partialorder %v556, %v1110
        %vm1178 = vcmp.ge.f32.partialorder %v560, %v1113
        %vm1179 = vcmp.ge.f32.partialorder %v562, %v1113
        %vm1180 = vcmp.ge.f32.partialorder %v566, %v1116
        %vm1181 = vcmp.ge.f32.partialorder %v568, %v1116
        %vm1182 = vcmp.ge.f32.partialorder %v572, %v1119
        %vm1183 = vcmp.ge.f32.partialorder %v574, %v1119
        %v1184 = vsel %vm1120, -3.4028235e+38, %v386
        %v1185 = vsel %vm1121, -3.4028235e+38, %v388
        %v1186 = vsel %vm1122, -3.4028235e+38, %v392
        %v1187 = vsel %vm1123, -3.4028235e+38, %v394
        %v1188 = vsel %vm1124, -3.4028235e+38, %v398
        %v1189 = vsel %vm1125, -3.4028235e+38, %v400
        %v1190 = vsel %vm1126, -3.4028235e+38, %v404
        %v1191 = vsel %vm1127, -3.4028235e+38, %v406
        %v1192 = vsel %vm1128, -3.4028235e+38, %v410
        %v1193 = vsel %vm1129, -3.4028235e+38, %v412
        %v1194 = vsel %vm1130, -3.4028235e+38, %v416
        %v1195 = vsel %vm1131, -3.4028235e+38, %v418
        %v1196 = vsel %vm1132, -3.4028235e+38, %v422
        %v1197 = vsel %vm1133, -3.4028235e+38, %v424
        %v1198 = vsel %vm1134, -3.4028235e+38, %v428
        %v1199 = vsel %vm1135, -3.4028235e+38, %v430
        %v1200 = vsel %vm1136, -3.4028235e+38, %v434
        %v1201 = vsel %vm1137, -3.4028235e+38, %v436
        %v1202 = vsel %vm1138, -3.4028235e+38, %v440
        %v1203 = vsel %vm1139, -3.4028235e+38, %v442
        %v1204 = vsel %vm1140, -3.4028235e+38, %v446
        %v1205 = vsel %vm1141, -3.4028235e+38, %v448
        %v1206 = vsel %vm1142, -3.4028235e+38, %v452
        %v1207 = vsel %vm1143, -3.4028235e+38, %v454
        %v1208 = vsel %vm1144, -3.4028235e+38, %v458
        %v1209 = vsel %vm1145, -3.4028235e+38, %v460
        %v1210 = vsel %vm1146, -3.4028235e+38, %v464
        %v1211 = vsel %vm1147, -3.4028235e+38, %v466
        %v1212 = vsel %vm1148, -3.4028235e+38, %v470
        %v1213 = vsel %vm1149, -3.4028235e+38, %v472
        %v1214 = vsel %vm1150, -3.4028235e+38, %v476
        %v1215 = vsel %vm1151, -3.4028235e+38, %v478
        %v1216 = vsel %vm1152, -3.4028235e+38, %v482
        %v1217 = vsel %vm1153, -3.4028235e+38, %v484
        %v1218 = vsel %vm1154, -3.4028235e+38, %v488
        %v1219 = vsel %vm1155, -3.4028235e+38, %v490
        %v1220 = vsel %vm1156, -3.4028235e+38, %v494
        %v1221 = vsel %vm1157, -3.4028235e+38, %v496
        %v1222 = vsel %vm1158, -3.4028235e+38, %v500
        %v1223 = vsel %vm1159, -3.4028235e+38, %v502
        %v1224 = vsel %vm1160, -3.4028235e+38, %v506
        %v1225 = vsel %vm1161, -3.4028235e+38, %v508
        %v1226 = vsel %vm1162, -3.4028235e+38, %v512
        %v1227 = vsel %vm1163, -3.4028235e+38, %v514
        %v1228 = vsel %vm1164, -3.4028235e+38, %v518
        %v1229 = vsel %vm1165, -3.4028235e+38, %v520
        %v1230 = vsel %vm1166, -3.4028235e+38, %v524
        %v1231 = vsel %vm1167, -3.4028235e+38, %v526
        %v1232 = vsel %vm1168, -3.4028235e+38, %v530
        %v1233 = vsel %vm1169, -3.4028235e+38, %v532
        %v1234 = vsel %vm1170, -3.4028235e+38, %v536
        %v1235 = vsel %vm1171, -3.4028235e+38, %v538
        %v1236 = vsel %vm1172, -3.4028235e+38, %v542
        %v1237 = vsel %vm1173, -3.4028235e+38, %v544
        %v1238 = vsel %vm1174, -3.4028235e+38, %v548
        %v1239 = vsel %vm1175, -3.4028235e+38, %v550
        %v1240 = vsel %vm1176, -3.4028235e+38, %v554
        %v1241 = vsel %vm1177, -3.4028235e+38, %v556
        %v1242 = vsel %vm1178, -3.4028235e+38, %v560
        %v1243 = vsel %vm1179, -3.4028235e+38, %v562
        %v1244 = vsel %vm1180, -3.4028235e+38, %v566
        %v1245 = vsel %vm1181, -3.4028235e+38, %v568
        %v1246 = vsel %vm1182, -3.4028235e+38, %v572
        %v1247 = vsel %vm1183, -3.4028235e+38, %v574
        %v1248 = vmax.f32 %v1184, %v1185
        %1249 = vmax.xlane.f32.xlu0 %v1248
        %v1250 = vpop.xlane.xlu0 %1249
        %v1251 = vmax.f32 %v1186, %v1187
        %1252 = vmax.xlane.f32.xlu0 %v1251
        %v1253 = vpop.xlane.xlu0 %1252
        %v1254 = vmax.f32 %v1188, %v1189
        %1255 = vmax.xlane.f32.xlu0 %v1254
        %v1256 = vpop.xlane.xlu0 %1255
        %v1257 = vmax.f32 %v1190, %v1191
        %1258 = vmax.xlane.f32.xlu0 %v1257
        %v1259 = vpop.xlane.xlu0 %1258
        %v1260 = vmax.f32 %v1192, %v1193
        %1261 = vmax.xlane.f32.xlu0 %v1260
        %v1262 = vpop.xlane.xlu0 %1261
        %v1263 = vmax.f32 %v1194, %v1195
        %1264 = vmax.xlane.f32.xlu0 %v1263
        %v1265 = vpop.xlane.xlu0 %1264
        %v1266 = vmax.f32 %v1196, %v1197
        %1267 = vmax.xlane.f32.xlu0 %v1266
        %v1268 = vpop.xlane.xlu0 %1267
        %v1269 = vmax.f32 %v1198, %v1199
        %1270 = vmax.xlane.f32.xlu0 %v1269
        %v1271 = vpop.xlane.xlu0 %1270
        %v1272 = vmax.f32 %v1200, %v1201
        %1273 = vmax.xlane.f32.xlu0 %v1272
        %v1274 = vpop.xlane.xlu0 %1273
        %v1275 = vmax.f32 %v1202, %v1203
        %1276 = vmax.xlane.f32.xlu0 %v1275
        %v1277 = vpop.xlane.xlu0 %1276
        %v1278 = vmax.f32 %v1204, %v1205
        %1279 = vmax.xlane.f32.xlu0 %v1278
        %v1280 = vpop.xlane.xlu0 %1279
        %v1281 = vmax.f32 %v1206, %v1207
        %1282 = vmax.xlane.f32.xlu0 %v1281
        %v1283 = vpop.xlane.xlu0 %1282
        %v1284 = vmax.f32 %v1208, %v1209
        %1285 = vmax.xlane.f32.xlu0 %v1284
        %v1286 = vpop.xlane.xlu0 %1285
        %v1287 = vmax.f32 %v1210, %v1211
        %1288 = vmax.xlane.f32.xlu0 %v1287
        %v1289 = vpop.xlane.xlu0 %1288
        %v1290 = vmax.f32 %v1212, %v1213
        %1291 = vmax.xlane.f32.xlu0 %v1290
        %v1292 = vpop.xlane.xlu0 %1291
        %v1293 = vmax.f32 %v1214, %v1215
        %1294 = vmax.xlane.f32.xlu0 %v1293
        %v1295 = vpop.xlane.xlu0 %1294
        %v1296 = vmax.f32 %v1216, %v1217
        %1297 = vmax.xlane.f32.xlu0 %v1296
        %v1298 = vpop.xlane.xlu0 %1297
        %v1299 = vmax.f32 %v1218, %v1219
        %1300 = vmax.xlane.f32.xlu0 %v1299
        %v1301 = vpop.xlane.xlu0 %1300
        %v1302 = vmax.f32 %v1220, %v1221
        %1303 = vmax.xlane.f32.xlu0 %v1302
        %v1304 = vpop.xlane.xlu0 %1303
        %v1305 = vmax.f32 %v1222, %v1223
        %1306 = vmax.xlane.f32.xlu0 %v1305
        %v1307 = vpop.xlane.xlu0 %1306
        %v1308 = vmax.f32 %v1224, %v1225
        %1309 = vmax.xlane.f32.xlu0 %v1308
        %v1310 = vpop.xlane.xlu0 %1309
        %v1311 = vmax.f32 %v1226, %v1227
        %1312 = vmax.xlane.f32.xlu0 %v1311
        %v1313 = vpop.xlane.xlu0 %1312
        %v1314 = vmax.f32 %v1228, %v1229
        %1315 = vmax.xlane.f32.xlu0 %v1314
        %v1316 = vpop.xlane.xlu0 %1315
        %v1317 = vmax.f32 %v1230, %v1231
        %1318 = vmax.xlane.f32.xlu0 %v1317
        %v1319 = vpop.xlane.xlu0 %1318
        %v1320 = vmax.f32 %v1232, %v1233
        %1321 = vmax.xlane.f32.xlu0 %v1320
        %v1322 = vpop.xlane.xlu0 %1321
        %v1323 = vmax.f32 %v1234, %v1235
        %1324 = vmax.xlane.f32.xlu0 %v1323
        %v1325 = vpop.xlane.xlu0 %1324
        %v1326 = vmax.f32 %v1236, %v1237
        %1327 = vmax.xlane.f32.xlu0 %v1326
        %v1328 = vpop.xlane.xlu0 %1327
        %v1329 = vmax.f32 %v1238, %v1239
        %1330 = vmax.xlane.f32.xlu0 %v1329
        %v1331 = vpop.xlane.xlu0 %1330
        %v1332 = vmax.f32 %v1240, %v1241
        %1333 = vmax.xlane.f32.xlu0 %v1332
        %v1334 = vpop.xlane.xlu0 %1333
        %v1335 = vmax.f32 %v1242, %v1243
        %1336 = vmax.xlane.f32.xlu0 %v1335
        %v1337 = vpop.xlane.xlu0 %1336
        %v1338 = vmax.f32 %v1244, %v1245
        %1339 = vmax.xlane.f32.xlu0 %v1338
        %v1340 = vpop.xlane.xlu0 %1339
        %v1341 = vmax.f32 %v1246, %v1247
        %1342 = vmax.xlane.f32.xlu0 %v1341
        %v1343 = vpop.xlane.xlu0 %1342
        %vm1344 = vcmp.ge.f32.partialorder %v386, %v1250
        %vm1345 = vcmp.ge.f32.partialorder %v388, %v1250
        %vm1346 = vcmp.ge.f32.partialorder %v392, %v1253
        %vm1347 = vcmp.ge.f32.partialorder %v394, %v1253
        %vm1348 = vcmp.ge.f32.partialorder %v398, %v1256
        %vm1349 = vcmp.ge.f32.partialorder %v400, %v1256
        %vm1350 = vcmp.ge.f32.partialorder %v404, %v1259
        %vm1351 = vcmp.ge.f32.partialorder %v406, %v1259
        %vm1352 = vcmp.ge.f32.partialorder %v410, %v1262
        %vm1353 = vcmp.ge.f32.partialorder %v412, %v1262
        %vm1354 = vcmp.ge.f32.partialorder %v416, %v1265
        %vm1355 = vcmp.ge.f32.partialorder %v418, %v1265
        %vm1356 = vcmp.ge.f32.partialorder %v422, %v1268
        %vm1357 = vcmp.ge.f32.partialorder %v424, %v1268
        %vm1358 = vcmp.ge.f32.partialorder %v428, %v1271
        %vm1359 = vcmp.ge.f32.partialorder %v430, %v1271
        %vm1360 = vcmp.ge.f32.partialorder %v434, %v1274
        %vm1361 = vcmp.ge.f32.partialorder %v436, %v1274
        %vm1362 = vcmp.ge.f32.partialorder %v440, %v1277
        %vm1363 = vcmp.ge.f32.partialorder %v442, %v1277
        %vm1364 = vcmp.ge.f32.partialorder %v446, %v1280
        %vm1365 = vcmp.ge.f32.partialorder %v448, %v1280
        %vm1366 = vcmp.ge.f32.partialorder %v452, %v1283
        %vm1367 = vcmp.ge.f32.partialorder %v454, %v1283
        %vm1368 = vcmp.ge.f32.partialorder %v458, %v1286
        %vm1369 = vcmp.ge.f32.partialorder %v460, %v1286
        %vm1370 = vcmp.ge.f32.partialorder %v464, %v1289
        %vm1371 = vcmp.ge.f32.partialorder %v466, %v1289
        %vm1372 = vcmp.ge.f32.partialorder %v470, %v1292
        %vm1373 = vcmp.ge.f32.partialorder %v472, %v1292
        %vm1374 = vcmp.ge.f32.partialorder %v476, %v1295
        %vm1375 = vcmp.ge.f32.partialorder %v478, %v1295
        %vm1376 = vcmp.ge.f32.partialorder %v482, %v1298
        %vm1377 = vcmp.ge.f32.partialorder %v484, %v1298
        %vm1378 = vcmp.ge.f32.partialorder %v488, %v1301
        %vm1379 = vcmp.ge.f32.partialorder %v490, %v1301
        %vm1380 = vcmp.ge.f32.partialorder %v494, %v1304
        %vm1381 = vcmp.ge.f32.partialorder %v496, %v1304
        %vm1382 = vcmp.ge.f32.partialorder %v500, %v1307
        %vm1383 = vcmp.ge.f32.partialorder %v502, %v1307
        %vm1384 = vcmp.ge.f32.partialorder %v506, %v1310
        %vm1385 = vcmp.ge.f32.partialorder %v508, %v1310
        %vm1386 = vcmp.ge.f32.partialorder %v512, %v1313
        %vm1387 = vcmp.ge.f32.partialorder %v514, %v1313
        %vm1388 = vcmp.ge.f32.partialorder %v518, %v1316
        %vm1389 = vcmp.ge.f32.partialorder %v520, %v1316
        %vm1390 = vcmp.ge.f32.partialorder %v524, %v1319
        %vm1391 = vcmp.ge.f32.partialorder %v526, %v1319
        %vm1392 = vcmp.ge.f32.partialorder %v530, %v1322
        %vm1393 = vcmp.ge.f32.partialorder %v532, %v1322
        %vm1394 = vcmp.ge.f32.partialorder %v536, %v1325
        %vm1395 = vcmp.ge.f32.partialorder %v538, %v1325
        %vm1396 = vcmp.ge.f32.partialorder %v542, %v1328
        %vm1397 = vcmp.ge.f32.partialorder %v544, %v1328
        %vm1398 = vcmp.ge.f32.partialorder %v548, %v1331
        %vm1399 = vcmp.ge.f32.partialorder %v550, %v1331
        %vm1400 = vcmp.ge.f32.partialorder %v554, %v1334
        %vm1401 = vcmp.ge.f32.partialorder %v556, %v1334
        %vm1402 = vcmp.ge.f32.partialorder %v560, %v1337
        %vm1403 = vcmp.ge.f32.partialorder %v562, %v1337
        %vm1404 = vcmp.ge.f32.partialorder %v566, %v1340
        %vm1405 = vcmp.ge.f32.partialorder %v568, %v1340
        %vm1406 = vcmp.ge.f32.partialorder %v572, %v1343
        %vm1407 = vcmp.ge.f32.partialorder %v574, %v1343
        %v1408 = vsub.f32 %v386, %v578
        %v1409 = vsub.f32 %v388, %v578
        %v1410 = vsub.f32 %v392, %v581
        %v1411 = vsub.f32 %v394, %v581
        %v1412 = vsub.f32 %v398, %v584
        %v1413 = vsub.f32 %v400, %v584
        %v1414 = vsub.f32 %v404, %v587
        %v1415 = vsub.f32 %v406, %v587
        %v1416 = vsub.f32 %v410, %v590
        %v1417 = vsub.f32 %v412, %v590
        %v1418 = vsub.f32 %v416, %v593
        %v1419 = vsub.f32 %v418, %v593
        %v1420 = vsub.f32 %v422, %v596
        %v1421 = vsub.f32 %v424, %v596
        %v1422 = vsub.f32 %v428, %v599
        %v1423 = vsub.f32 %v430, %v599
        %v1424 = vsub.f32 %v434, %v602
        %v1425 = vsub.f32 %v436, %v602
        %v1426 = vsub.f32 %v440, %v605
        %v1427 = vsub.f32 %v442, %v605
        %v1428 = vsub.f32 %v446, %v608
        %v1429 = vsub.f32 %v448, %v608
        %v1430 = vsub.f32 %v452, %v611
        %v1431 = vsub.f32 %v454, %v611
        %v1432 = vsub.f32 %v458, %v614
        %v1433 = vsub.f32 %v460, %v614
        %v1434 = vsub.f32 %v464, %v617
        %v1435 = vsub.f32 %v466, %v617
        %v1436 = vsub.f32 %v470, %v620
        %v1437 = vsub.f32 %v472, %v620
        %v1438 = vsub.f32 %v476, %v623
        %v1439 = vsub.f32 %v478, %v623
        %v1440 = vsub.f32 %v482, %v626
        %v1441 = vsub.f32 %v484, %v626
        %v1442 = vsub.f32 %v488, %v629
        %v1443 = vsub.f32 %v490, %v629
        %v1444 = vsub.f32 %v494, %v632
        %v1445 = vsub.f32 %v496, %v632
        %v1446 = vsub.f32 %v500, %v635
        %v1447 = vsub.f32 %v502, %v635
        %v1448 = vsub.f32 %v506, %v638
        %v1449 = vsub.f32 %v508, %v638
        %v1450 = vsub.f32 %v512, %v641
        %v1451 = vsub.f32 %v514, %v641
        %v1452 = vsub.f32 %v518, %v644
        %v1453 = vsub.f32 %v520, %v644
        %v1454 = vsub.f32 %v524, %v647
        %v1455 = vsub.f32 %v526, %v647
        %v1456 = vsub.f32 %v530, %v650
        %v1457 = vsub.f32 %v532, %v650
        %v1458 = vsub.f32 %v536, %v653
        %v1459 = vsub.f32 %v538, %v653
        %v1460 = vsub.f32 %v542, %v656
        %v1461 = vsub.f32 %v544, %v656
        %v1462 = vsub.f32 %v548, %v659
        %v1463 = vsub.f32 %v550, %v659
        %v1464 = vsub.f32 %v554, %v662
        %v1465 = vsub.f32 %v556, %v662
        %v1466 = vsub.f32 %v560, %v665
        %v1467 = vsub.f32 %v562, %v665
        %v1468 = vsub.f32 %v566, %v668
        %v1469 = vsub.f32 %v568, %v668
        %v1470 = vsub.f32 %v572, %v671
        %v1471 = vsub.f32 %v574, %v671
        %v1472 = vmul.f32 %v1408, 1.442695
        %v1473 = vpow.pop %v1472
        %v1474 = vmul.f32 %v1409, 1.442695
        %v1475 = vpow.pop %v1474
        %v1476 = vmul.f32 %v1410, 1.442695
        %v1477 = vpow.pop %v1476
        %v1478 = vmul.f32 %v1411, 1.442695
        %v1479 = vpow.pop %v1478
        %v1480 = vmul.f32 %v1412, 1.442695
        %v1481 = vpow.pop %v1480
        %v1482 = vmul.f32 %v1413, 1.442695
        %v1483 = vpow.pop %v1482
        %v1484 = vmul.f32 %v1414, 1.442695
        %v1485 = vpow.pop %v1484
        %v1486 = vmul.f32 %v1415, 1.442695
        %v1487 = vpow.pop %v1486
        %v1488 = vmul.f32 %v1416, 1.442695
        %v1489 = vpow.pop %v1488
        %v1490 = vmul.f32 %v1417, 1.442695
        %v1491 = vpow.pop %v1490
        %v1492 = vmul.f32 %v1418, 1.442695
        %v1493 = vpow.pop %v1492
        %v1494 = vmul.f32 %v1419, 1.442695
        %v1495 = vpow.pop %v1494
        %v1496 = vmul.f32 %v1420, 1.442695
        %v1497 = vpow.pop %v1496
        %v1498 = vmul.f32 %v1421, 1.442695
        %v1499 = vpow.pop %v1498
        %v1500 = vmul.f32 %v1422, 1.442695
        %v1501 = vpow.pop %v1500
        %v1502 = vmul.f32 %v1423, 1.442695
        %v1503 = vpow.pop %v1502
        %v1504 = vmul.f32 %v1424, 1.442695
        %v1505 = vpow.pop %v1504
        %v1506 = vmul.f32 %v1425, 1.442695
        %v1507 = vpow.pop %v1506
        %v1508 = vmul.f32 %v1426, 1.442695
        %v1509 = vpow.pop %v1508
        %v1510 = vmul.f32 %v1427, 1.442695
        %v1511 = vpow.pop %v1510
        %v1512 = vmul.f32 %v1428, 1.442695
        %v1513 = vpow.pop %v1512
        %v1514 = vmul.f32 %v1429, 1.442695
        %v1515 = vpow.pop %v1514
        %v1516 = vmul.f32 %v1430, 1.442695
        %v1517 = vpow.pop %v1516
        %v1518 = vmul.f32 %v1431, 1.442695
        %v1519 = vpow.pop %v1518
        %v1520 = vmul.f32 %v1432, 1.442695
        %v1521 = vpow.pop %v1520
        %v1522 = vmul.f32 %v1433, 1.442695
        %v1523 = vpow.pop %v1522
        %v1524 = vmul.f32 %v1434, 1.442695
        %v1525 = vpow.pop %v1524
        %v1526 = vmul.f32 %v1435, 1.442695
        %v1527 = vpow.pop %v1526
        %v1528 = vmul.f32 %v1436, 1.442695
        %v1529 = vpow.pop %v1528
        %v1530 = vmul.f32 %v1437, 1.442695
        %v1531 = vpow.pop %v1530
        %v1532 = vmul.f32 %v1438, 1.442695
        %v1533 = vpow.pop %v1532
        %v1534 = vmul.f32 %v1439, 1.442695
        %v1535 = vpow.pop %v1534
        %v1536 = vmul.f32 %v1440, 1.442695
        %v1537 = vpow.pop %v1536
        %v1538 = vmul.f32 %v1441, 1.442695
        %v1539 = vpow.pop %v1538
        %v1540 = vmul.f32 %v1442, 1.442695
        %v1541 = vpow.pop %v1540
        %v1542 = vmul.f32 %v1443, 1.442695
        %v1543 = vpow.pop %v1542
        %v1544 = vmul.f32 %v1444, 1.442695
        %v1545 = vpow.pop %v1544
        %v1546 = vmul.f32 %v1445, 1.442695
        %v1547 = vpow.pop %v1546
        %v1548 = vmul.f32 %v1446, 1.442695
        %v1549 = vpow.pop %v1548
        %v1550 = vmul.f32 %v1447, 1.442695
        %v1551 = vpow.pop %v1550
        %v1552 = vmul.f32 %v1448, 1.442695
        %v1553 = vpow.pop %v1552
        %v1554 = vmul.f32 %v1449, 1.442695
        %v1555 = vpow.pop %v1554
        %v1556 = vmul.f32 %v1450, 1.442695
        %v1557 = vpow.pop %v1556
        %v1558 = vmul.f32 %v1451, 1.442695
        %v1559 = vpow.pop %v1558
        %v1560 = vmul.f32 %v1452, 1.442695
        %v1561 = vpow.pop %v1560
        %v1562 = vmul.f32 %v1453, 1.442695
        %v1563 = vpow.pop %v1562
        %v1564 = vmul.f32 %v1454, 1.442695
        %v1565 = vpow.pop %v1564
        %v1566 = vmul.f32 %v1455, 1.442695
        %v1567 = vpow.pop %v1566
        %v1568 = vmul.f32 %v1456, 1.442695
        %v1569 = vpow.pop %v1568
        %v1570 = vmul.f32 %v1457, 1.442695
        %v1571 = vpow.pop %v1570
        %v1572 = vmul.f32 %v1458, 1.442695
        %v1573 = vpow.pop %v1572
        %v1574 = vmul.f32 %v1459, 1.442695
        %v1575 = vpow.pop %v1574
        %v1576 = vmul.f32 %v1460, 1.442695
        %v1577 = vpow.pop %v1576
        %v1578 = vmul.f32 %v1461, 1.442695
        %v1579 = vpow.pop %v1578
        %v1580 = vmul.f32 %v1462, 1.442695
        %v1581 = vpow.pop %v1580
        %v1582 = vmul.f32 %v1463, 1.442695
        %v1583 = vpow.pop %v1582
        %v1584 = vmul.f32 %v1464, 1.442695
        %v1585 = vpow.pop %v1584
        %v1586 = vmul.f32 %v1465, 1.442695
        %v1587 = vpow.pop %v1586
        %v1588 = vmul.f32 %v1466, 1.442695
        %v1589 = vpow.pop %v1588
        %v1590 = vmul.f32 %v1467, 1.442695
        %v1591 = vpow.pop %v1590
        %v1592 = vmul.f32 %v1468, 1.442695
        %v1593 = vpow.pop %v1592
        %v1594 = vmul.f32 %v1469, 1.442695
        %v1595 = vpow.pop %v1594
        %v1596 = vmul.f32 %v1470, 1.442695
        %v1597 = vpow.pop %v1596
        %v1598 = vmul.f32 %v1471, 1.442695
        %v1599 = vpow.pop %v1598
        %v1600 = vsel %vm1344, %v1473, 0.0
        %v1601 = vsel %vm1345, %v1475, 0.0
        %v1602 = vsel %vm1346, %v1477, 0.0
        %v1603 = vsel %vm1347, %v1479, 0.0
        %v1604 = vsel %vm1348, %v1481, 0.0
        %v1605 = vsel %vm1349, %v1483, 0.0
        %v1606 = vsel %vm1350, %v1485, 0.0
        %v1607 = vsel %vm1351, %v1487, 0.0
        %v1608 = vsel %vm1352, %v1489, 0.0
        %v1609 = vsel %vm1353, %v1491, 0.0
        %v1610 = vsel %vm1354, %v1493, 0.0
        %v1611 = vsel %vm1355, %v1495, 0.0
        %v1612 = vsel %vm1356, %v1497, 0.0
        %v1613 = vsel %vm1357, %v1499, 0.0
        %v1614 = vsel %vm1358, %v1501, 0.0
        %v1615 = vsel %vm1359, %v1503, 0.0
        %v1616 = vsel %vm1360, %v1505, 0.0
        %v1617 = vsel %vm1361, %v1507, 0.0
        %v1618 = vsel %vm1362, %v1509, 0.0
        %v1619 = vsel %vm1363, %v1511, 0.0
        %v1620 = vsel %vm1364, %v1513, 0.0
        %v1621 = vsel %vm1365, %v1515, 0.0
        %v1622 = vsel %vm1366, %v1517, 0.0
        %v1623 = vsel %vm1367, %v1519, 0.0
        %v1624 = vsel %vm1368, %v1521, 0.0
        %v1625 = vsel %vm1369, %v1523, 0.0
        %v1626 = vsel %vm1370, %v1525, 0.0
        %v1627 = vsel %vm1371, %v1527, 0.0
        %v1628 = vsel %vm1372, %v1529, 0.0
        %v1629 = vsel %vm1373, %v1531, 0.0
        %v1630 = vsel %vm1374, %v1533, 0.0
        %v1631 = vsel %vm1375, %v1535, 0.0
        %v1632 = vsel %vm1376, %v1537, 0.0
        %v1633 = vsel %vm1377, %v1539, 0.0
        %v1634 = vsel %vm1378, %v1541, 0.0
        %v1635 = vsel %vm1379, %v1543, 0.0
        %v1636 = vsel %vm1380, %v1545, 0.0
        %v1637 = vsel %vm1381, %v1547, 0.0
        %v1638 = vsel %vm1382, %v1549, 0.0
        %v1639 = vsel %vm1383, %v1551, 0.0
        %v1640 = vsel %vm1384, %v1553, 0.0
        %v1641 = vsel %vm1385, %v1555, 0.0
        %v1642 = vsel %vm1386, %v1557, 0.0
        %v1643 = vsel %vm1387, %v1559, 0.0
        %v1644 = vsel %vm1388, %v1561, 0.0
        %v1645 = vsel %vm1389, %v1563, 0.0
        %v1646 = vsel %vm1390, %v1565, 0.0
        %v1647 = vsel %vm1391, %v1567, 0.0
        %v1648 = vsel %vm1392, %v1569, 0.0
        %v1649 = vsel %vm1393, %v1571, 0.0
        %v1650 = vsel %vm1394, %v1573, 0.0
        %v1651 = vsel %vm1395, %v1575, 0.0
        %v1652 = vsel %vm1396, %v1577, 0.0
        %v1653 = vsel %vm1397, %v1579, 0.0
        %v1654 = vsel %vm1398, %v1581, 0.0
        %v1655 = vsel %vm1399, %v1583, 0.0
        %v1656 = vsel %vm1400, %v1585, 0.0
        %v1657 = vsel %vm1401, %v1587, 0.0
        %v1658 = vsel %vm1402, %v1589, 0.0
        %v1659 = vsel %vm1403, %v1591, 0.0
        %v1660 = vsel %vm1404, %v1593, 0.0
        %v1661 = vsel %vm1405, %v1595, 0.0
        %v1662 = vsel %vm1406, %v1597, 0.0
        %v1663 = vsel %vm1407, %v1599, 0.0
        %v1664 = vadd.f32 %v1600, %v1601
        %1665 = vadd.xlane.f32.xlu0 %v1664
        %v1666 = vpop.xlane.xlu0 %1665
        %v1667 = vadd.f32 %v1602, %v1603
        %1668 = vadd.xlane.f32.xlu0 %v1667
        %v1669 = vpop.xlane.xlu0 %1668
        %v1670 = vadd.f32 %v1604, %v1605
        %1671 = vadd.xlane.f32.xlu0 %v1670
        %v1672 = vpop.xlane.xlu0 %1671
        %v1673 = vadd.f32 %v1606, %v1607
        %1674 = vadd.xlane.f32.xlu0 %v1673
        %v1675 = vpop.xlane.xlu0 %1674
        %v1676 = vadd.f32 %v1608, %v1609
        %1677 = vadd.xlane.f32.xlu0 %v1676
        %v1678 = vpop.xlane.xlu0 %1677
        %v1679 = vadd.f32 %v1610, %v1611
        %1680 = vadd.xlane.f32.xlu0 %v1679
        %v1681 = vpop.xlane.xlu0 %1680
        %v1682 = vadd.f32 %v1612, %v1613
        %1683 = vadd.xlane.f32.xlu0 %v1682
        %v1684 = vpop.xlane.xlu0 %1683
        %v1685 = vadd.f32 %v1614, %v1615
        %1686 = vadd.xlane.f32.xlu0 %v1685
        %v1687 = vpop.xlane.xlu0 %1686
        %v1688 = vadd.f32 %v1616, %v1617
        %1689 = vadd.xlane.f32.xlu0 %v1688
        %v1690 = vpop.xlane.xlu0 %1689
        %v1691 = vadd.f32 %v1618, %v1619
        %1692 = vadd.xlane.f32.xlu0 %v1691
        %v1693 = vpop.xlane.xlu0 %1692
        %v1694 = vadd.f32 %v1620, %v1621
        %1695 = vadd.xlane.f32.xlu0 %v1694
        %v1696 = vpop.xlane.xlu0 %1695
        %v1697 = vadd.f32 %v1622, %v1623
        %1698 = vadd.xlane.f32.xlu0 %v1697
        %v1699 = vpop.xlane.xlu0 %1698
        %v1700 = vadd.f32 %v1624, %v1625
        %1701 = vadd.xlane.f32.xlu0 %v1700
        %v1702 = vpop.xlane.xlu0 %1701
        %v1703 = vadd.f32 %v1626, %v1627
        %1704 = vadd.xlane.f32.xlu0 %v1703
        %v1705 = vpop.xlane.xlu0 %1704
        %v1706 = vadd.f32 %v1628, %v1629
        %1707 = vadd.xlane.f32.xlu0 %v1706
        %v1708 = vpop.xlane.xlu0 %1707
        %v1709 = vadd.f32 %v1630, %v1631
        %1710 = vadd.xlane.f32.xlu0 %v1709
        %v1711 = vpop.xlane.xlu0 %1710
        %v1712 = vadd.f32 %v1632, %v1633
        %1713 = vadd.xlane.f32.xlu0 %v1712
        %v1714 = vpop.xlane.xlu0 %1713
        %v1715 = vadd.f32 %v1634, %v1635
        %1716 = vadd.xlane.f32.xlu0 %v1715
        %v1717 = vpop.xlane.xlu0 %1716
        %v1718 = vadd.f32 %v1636, %v1637
        %1719 = vadd.xlane.f32.xlu0 %v1718
        %v1720 = vpop.xlane.xlu0 %1719
        %v1721 = vadd.f32 %v1638, %v1639
        %1722 = vadd.xlane.f32.xlu0 %v1721
        %v1723 = vpop.xlane.xlu0 %1722
        %v1724 = vadd.f32 %v1640, %v1641
        %1725 = vadd.xlane.f32.xlu0 %v1724
        %v1726 = vpop.xlane.xlu0 %1725
        %v1727 = vadd.f32 %v1642, %v1643
        %1728 = vadd.xlane.f32.xlu0 %v1727
        %v1729 = vpop.xlane.xlu0 %1728
        %v1730 = vadd.f32 %v1644, %v1645
        %1731 = vadd.xlane.f32.xlu0 %v1730
        %v1732 = vpop.xlane.xlu0 %1731
        %v1733 = vadd.f32 %v1646, %v1647
        %1734 = vadd.xlane.f32.xlu0 %v1733
        %v1735 = vpop.xlane.xlu0 %1734
        %v1736 = vadd.f32 %v1648, %v1649
        %1737 = vadd.xlane.f32.xlu0 %v1736
        %v1738 = vpop.xlane.xlu0 %1737
        %v1739 = vadd.f32 %v1650, %v1651
        %1740 = vadd.xlane.f32.xlu0 %v1739
        %v1741 = vpop.xlane.xlu0 %1740
        %v1742 = vadd.f32 %v1652, %v1653
        %1743 = vadd.xlane.f32.xlu0 %v1742
        %v1744 = vpop.xlane.xlu0 %1743
        %v1745 = vadd.f32 %v1654, %v1655
        %1746 = vadd.xlane.f32.xlu0 %v1745
        %v1747 = vpop.xlane.xlu0 %1746
        %v1748 = vadd.f32 %v1656, %v1657
        %1749 = vadd.xlane.f32.xlu0 %v1748
        %v1750 = vpop.xlane.xlu0 %1749
        %v1751 = vadd.f32 %v1658, %v1659
        %1752 = vadd.xlane.f32.xlu0 %v1751
        %v1753 = vpop.xlane.xlu0 %1752
        %v1754 = vadd.f32 %v1660, %v1661
        %1755 = vadd.xlane.f32.xlu0 %v1754
        %v1756 = vpop.xlane.xlu0 %1755
        %v1757 = vadd.f32 %v1662, %v1663
        %1758 = vadd.xlane.f32.xlu0 %v1757
        %v1759 = vpop.xlane.xlu0 %1758
        %v1760 = vpack.c.bf16 %v1602, %v1600
        %v1761 = vpack.c.bf16 %v1603, %v1601
        %v1762 = vpack.c.bf16 %v1606, %v1604
        %v1763 = vpack.c.bf16 %v1607, %v1605
        %v1764 = vpack.c.bf16 %v1610, %v1608
        %v1765 = vpack.c.bf16 %v1611, %v1609
        %v1766 = vpack.c.bf16 %v1614, %v1612
        %v1767 = vpack.c.bf16 %v1615, %v1613
        %v1768 = vpack.c.bf16 %v1618, %v1616
        %v1769 = vpack.c.bf16 %v1619, %v1617
        %v1770 = vpack.c.bf16 %v1622, %v1620
        %v1771 = vpack.c.bf16 %v1623, %v1621
        %v1772 = vpack.c.bf16 %v1626, %v1624
        %v1773 = vpack.c.bf16 %v1627, %v1625
        %v1774 = vpack.c.bf16 %v1630, %v1628
        %v1775 = vpack.c.bf16 %v1631, %v1629
        %v1776 = vpack.c.bf16 %v1634, %v1632
        %v1777 = vpack.c.bf16 %v1635, %v1633
        %v1778 = vpack.c.bf16 %v1638, %v1636
        %v1779 = vpack.c.bf16 %v1639, %v1637
        %v1780 = vpack.c.bf16 %v1642, %v1640
        %v1781 = vpack.c.bf16 %v1643, %v1641
        %v1782 = vpack.c.bf16 %v1646, %v1644
        %v1783 = vpack.c.bf16 %v1647, %v1645
        %v1784 = vpack.c.bf16 %v1650, %v1648
        %v1785 = vpack.c.bf16 %v1651, %v1649
        %v1786 = vpack.c.bf16 %v1654, %v1652
        %v1787 = vpack.c.bf16 %v1655, %v1653
        %v1788 = vpack.c.bf16 %v1658, %v1656
        %v1789 = vpack.c.bf16 %v1659, %v1657
        %v1790 = vpack.c.bf16 %v1662, %v1660
        %v1791 = vpack.c.bf16 %v1663, %v1661
        %v1792 = vld [vmem:[#allocation7] sm:$0xff]
        %v1793 = vld [vmem:[#allocation7 + $0x8] sm:$0xff]
        %v1794 = vld [vmem:[#allocation7 + $0x10] sm:$0xff]
        %v1795 = vld [vmem:[#allocation7 + $0x18] sm:$0xff]
        %v1796 = vld [vmem:[#allocation7 + $0x20] sm:$0xff]
        %v1797 = vld [vmem:[#allocation7 + $0x28] sm:$0xff]
        %v1798 = vld [vmem:[#allocation7 + $0x30] sm:$0xff]
        %v1799 = vld [vmem:[#allocation7 + $0x38] sm:$0xff]
        %v1800 = vld [vmem:[#allocation7 + $0x40] sm:$0xff]
        %v1801 = vld [vmem:[#allocation7 + $0x48] sm:$0xff]
        %v1802 = vld [vmem:[#allocation7 + $0x50] sm:$0xff]
        %v1803 = vld [vmem:[#allocation7 + $0x58] sm:$0xff]
        %v1804 = vld [vmem:[#allocation7 + $0x60] sm:$0xff]
        %v1805 = vld [vmem:[#allocation7 + $0x68] sm:$0xff]
        %v1806 = vld [vmem:[#allocation7 + $0x70] sm:$0xff]
        %v1807 = vld [vmem:[#allocation7 + $0x78] sm:$0xff]
        %v1808 = vld [vmem:[#allocation7 + $0x80] sm:$0xff]
        %v1809 = vld [vmem:[#allocation7 + $0x88] sm:$0xff]
        %v1810 = vld [vmem:[#allocation7 + $0x90] sm:$0xff]
        %v1811 = vld [vmem:[#allocation7 + $0x98] sm:$0xff]
        %v1812 = vld [vmem:[#allocation7 + $0xa0] sm:$0xff]
        %v1813 = vld [vmem:[#allocation7 + $0xa8] sm:$0xff]
        %v1814 = vld [vmem:[#allocation7 + $0xb0] sm:$0xff]
        %v1815 = vld [vmem:[#allocation7 + $0xb8] sm:$0xff]
        %v1816 = vld [vmem:[#allocation7 + $0xc0] sm:$0xff]
        %v1817 = vld [vmem:[#allocation7 + $0xc8] sm:$0xff]
        %v1818 = vld [vmem:[#allocation7 + $0xd0] sm:$0xff]
        %v1819 = vld [vmem:[#allocation7 + $0xd8] sm:$0xff]
        %v1820 = vld [vmem:[#allocation7 + $0xe0] sm:$0xff]
        %v1821 = vld [vmem:[#allocation7 + $0xe8] sm:$0xff]
        %v1822 = vld [vmem:[#allocation7 + $0xf0] sm:$0xff]
        %v1823 = vld [vmem:[#allocation7 + $0xf8] sm:$0xff]
        %v1824 = vpack.c.bf16 %v1793, %v1792
        %v1825 = vpack.c.bf16 %v1795, %v1794
        %v1826 = vpack.c.bf16 %v1797, %v1796
        %v1827 = vpack.c.bf16 %v1799, %v1798
        %v1828 = vpack.c.bf16 %v1801, %v1800
        %v1829 = vpack.c.bf16 %v1803, %v1802
        %v1830 = vpack.c.bf16 %v1805, %v1804
        %v1831 = vpack.c.bf16 %v1807, %v1806
        %v1832 = vpack.c.bf16 %v1809, %v1808
        %v1833 = vpack.c.bf16 %v1811, %v1810
        %v1834 = vpack.c.bf16 %v1813, %v1812
        %v1835 = vpack.c.bf16 %v1815, %v1814
        %v1836 = vpack.c.bf16 %v1817, %v1816
        %v1837 = vpack.c.bf16 %v1819, %v1818
        %v1838 = vpack.c.bf16 %v1821, %v1820
        %v1839 = vpack.c.bf16 %v1823, %v1822
        %1840 = vmatprep.subr.bf16.mxu0 0
        %1841 = vmatpush1.bf16.msra.mxu0 %v1824
        %1842 = vmatprep.subr.bf16.mxu0 0
        %1843 = vmatpush1.bf16.msra.mxu0 %v1825
        %1844 = vmatprep.subr.bf16.mxu0 0
        %1845 = vmatpush1.bf16.msra.mxu0 %v1826
        %1846 = vmatprep.subr.bf16.mxu0 0
        %1847 = vmatpush1.bf16.msra.mxu0 %v1827
        %1848 = vmatprep.subr.bf16.mxu0 0
        %1849 = vmatpush1.bf16.msra.mxu0 %v1828
        %1850 = vmatprep.subr.bf16.mxu0 0
        %1851 = vmatpush1.bf16.msra.mxu0 %v1829
        %1852 = vmatprep.subr.bf16.mxu0 0
        %1853 = vmatpush1.bf16.msra.mxu0 %v1830
        %1854 = vmatprep.subr.bf16.mxu0 0
        %1855 = vmatpush1.bf16.msra.mxu0 %v1831
        %1856 = vmatprep.subr.bf16.mxu0 0
        %1857 = vmatpush1.bf16.msra.mxu0 %v1832
        %1858 = vmatprep.subr.bf16.mxu0 0
        %1859 = vmatpush1.bf16.msra.mxu0 %v1833
        %1860 = vmatprep.subr.bf16.mxu0 0
        %1861 = vmatpush1.bf16.msra.mxu0 %v1834
        %1862 = vmatprep.subr.bf16.mxu0 0
        %1863 = vmatpush1.bf16.msra.mxu0 %v1835
        %1864 = vmatprep.subr.bf16.mxu0 0
        %1865 = vmatpush1.bf16.msra.mxu0 %v1836
        %1866 = vmatprep.subr.bf16.mxu0 0
        %1867 = vmatpush1.bf16.msra.mxu0 %v1837
        %1868 = vmatprep.subr.bf16.mxu0 0
        %1869 = vmatpush1.bf16.msra.mxu0 %v1838
        %1870 = vmatprep.subr.bf16.mxu0 0
        %1871 = vmatpush1.bf16.msra.mxu0 %v1839
        %1872 = vmatprep.mubr.bf16.mxu0 %v1761
        %1873 = vmatmul.mubr.bf16.gmra.mrb[0].mxu0 %v1760
        %v1874 = vpop.f32.mrb[0].mxu0
        %v1875 = vadd.f32 0.0, %v1874
        %v1876 = vpop.f32.mrb[0].mxu0
        %v1877 = vpop.f32.mrb[0].mxu0
        %v1878 = vadd.f32 0.0, %v1877
        %v1879 = vpop.f32.mrb[0].mxu0
        %1880 = vmatprep.mubr.bf16.mxu0 %v1763
        %1881 = vmatmul.mubr.bf16.gmra.mrb[0].mxu0 %v1762
        %v1882 = vpop.f32.mrb[0].mxu0
        %v1883 = vadd.f32 0.0, %v1882
        %v1884 = vpop.f32.mrb[0].mxu0
        %v1885 = vpop.f32.mrb[0].mxu0
        %v1886 = vadd.f32 0.0, %v1885
        %v1887 = vpop.f32.mrb[0].mxu0
        %1888 = vmatprep.mubr.bf16.mxu0 %v1765
        %1889 = vmatmul.mubr.bf16.gmra.mrb[0].mxu0 %v1764
        %v1890 = vpop.f32.mrb[0].mxu0
        %v1891 = vadd.f32 0.0, %v1890
        %v1892 = vpop.f32.mrb[0].mxu0
        %v1893 = vpop.f32.mrb[0].mxu0
        %v1894 = vadd.f32 0.0, %v1893
        %v1895 = vpop.f32.mrb[0].mxu0
        %1896 = vmatprep.mubr.bf16.mxu0 %v1767
        %1897 = vmatmul.mubr.bf16.gmra.mrb[0].mxu0 %v1766
        %v1898 = vpop.f32.mrb[0].mxu0
        %v1899 = vadd.f32 0.0, %v1898
        %v1900 = vpop.f32.mrb[0].mxu0
        %v1901 = vpop.f32.mrb[0].mxu0
        %v1902 = vadd.f32 0.0, %v1901
        %v1903 = vpop.f32.mrb[0].mxu0
        %1904 = vmatprep.mubr.bf16.mxu0 %v1769
        %1905 = vmatmul.mubr.bf16.gmra.mrb[0].mxu0 %v1768
        %v1906 = vpop.f32.mrb[0].mxu0
        %v1907 = vadd.f32 0.0, %v1906
        %v1908 = vpop.f32.mrb[0].mxu0
        %v1909 = vpop.f32.mrb[0].mxu0
        %v1910 = vadd.f32 0.0, %v1909
        %v1911 = vpop.f32.mrb[0].mxu0
        %1912 = vmatprep.mubr.bf16.mxu0 %v1771
        %1913 = vmatmul.mubr.bf16.gmra.mrb[0].mxu0 %v1770
        %v1914 = vpop.f32.mrb[0].mxu0
        %v1915 = vadd.f32 0.0, %v1914
        %v1916 = vpop.f32.mrb[0].mxu0
        %v1917 = vpop.f32.mrb[0].mxu0
        %v1918 = vadd.f32 0.0, %v1917
        %v1919 = vpop.f32.mrb[0].mxu0
        %1920 = vmatprep.mubr.bf16.mxu0 %v1773
        %1921 = vmatmul.mubr.bf16.gmra.mrb[0].mxu0 %v1772
        %v1922 = vpop.f32.mrb[0].mxu0
        %v1923 = vadd.f32 0.0, %v1922
        %v1924 = vpop.f32.mrb[0].mxu0
        %v1925 = vpop.f32.mrb[0].mxu0
        %v1926 = vadd.f32 0.0, %v1925
        %v1927 = vpop.f32.mrb[0].mxu0
        %1928 = vmatprep.mubr.bf16.mxu0 %v1775
        %1929 = vmatmul.mubr.bf16.gmra.mrb[0].mxu0 %v1774
        %v1930 = vpop.f32.mrb[0].mxu0
        %v1931 = vadd.f32 0.0, %v1930
        %v1932 = vpop.f32.mrb[0].mxu0
        %v1933 = vpop.f32.mrb[0].mxu0
        %v1934 = vadd.f32 0.0, %v1933
        %v1935 = vpop.f32.mrb[0].mxu0
        %1936 = vmatprep.mubr.bf16.mxu0 %v1777
        %1937 = vmatmul.mubr.bf16.gmra.mrb[0].mxu0 %v1776
        %v1938 = vpop.f32.mrb[0].mxu0
        %v1939 = vadd.f32 0.0, %v1938
        %v1940 = vpop.f32.mrb[0].mxu0
        %v1941 = vpop.f32.mrb[0].mxu0
        %v1942 = vadd.f32 0.0, %v1941
        %v1943 = vpop.f32.mrb[0].mxu0
        %1944 = vmatprep.mubr.bf16.mxu0 %v1779
        %1945 = vmatmul.mubr.bf16.gmra.mrb[0].mxu0 %v1778
        %v1946 = vpop.f32.mrb[0].mxu0
        %v1947 = vadd.f32 0.0, %v1946
        %v1948 = vpop.f32.mrb[0].mxu0
        %v1949 = vpop.f32.mrb[0].mxu0
        %v1950 = vadd.f32 0.0, %v1949
        %v1951 = vpop.f32.mrb[0].mxu0
        %1952 = vmatprep.mubr.bf16.mxu0 %v1781
        %1953 = vmatmul.mubr.bf16.gmra.mrb[0].mxu0 %v1780
        %v1954 = vpop.f32.mrb[0].mxu0
        %v1955 = vadd.f32 0.0, %v1954
        %v1956 = vpop.f32.mrb[0].mxu0
        %v1957 = vpop.f32.mrb[0].mxu0
        %v1958 = vadd.f32 0.0, %v1957
        %v1959 = vpop.f32.mrb[0].mxu0
        %1960 = vmatprep.mubr.bf16.mxu0 %v1783
        %1961 = vmatmul.mubr.bf16.gmra.mrb[0].mxu0 %v1782
        %v1962 = vpop.f32.mrb[0].mxu0
        %v1963 = vadd.f32 0.0, %v1962
        %v1964 = vpop.f32.mrb[0].mxu0
        %v1965 = vpop.f32.mrb[0].mxu0
        %v1966 = vadd.f32 0.0, %v1965
        %v1967 = vpop.f32.mrb[0].mxu0
        %1968 = vmatprep.mubr.bf16.mxu0 %v1785
        %1969 = vmatmul.mubr.bf16.gmra.mrb[0].mxu0 %v1784
        %v1970 = vpop.f32.mrb[0].mxu0
        %v1971 = vadd.f32 0.0, %v1970
        %v1972 = vpop.f32.mrb[0].mxu0
        %v1973 = vpop.f32.mrb[0].mxu0
        %v1974 = vadd.f32 0.0, %v1973
        %v1975 = vpop.f32.mrb[0].mxu0
        %1976 = vmatprep.mubr.bf16.mxu0 %v1787
        %1977 = vmatmul.mubr.bf16.gmra.mrb[0].mxu0 %v1786
        %v1978 = vpop.f32.mrb[0].mxu0
        %v1979 = vadd.f32 0.0, %v1978
        %v1980 = vpop.f32.mrb[0].mxu0
        %v1981 = vpop.f32.mrb[0].mxu0
        %v1982 = vadd.f32 0.0, %v1981
        %v1983 = vpop.f32.mrb[0].mxu0
        %1984 = vmatprep.mubr.bf16.mxu0 %v1789
        %1985 = vmatmul.mubr.bf16.gmra.mrb[0].mxu0 %v1788
        %v1986 = vpop.f32.mrb[0].mxu0
        %v1987 = vadd.f32 0.0, %v1986
        %v1988 = vpop.f32.mrb[0].mxu0
        %v1989 = vpop.f32.mrb[0].mxu0
        %v1990 = vadd.f32 0.0, %v1989
        %v1991 = vpop.f32.mrb[0].mxu0
        %1992 = vmatprep.mubr.bf16.mxu0 %v1791
        %1993 = vmatmul.mubr.bf16.gmra.mrb[0].mxu0 %v1790
        %v1994 = vpop.f32.mrb[0].mxu0
        %v1995 = vadd.f32 0.0, %v1994
        %v1996 = vpop.f32.mrb[0].mxu0
        %v1997 = vpop.f32.mrb[0].mxu0
        %v1998 = vadd.f32 0.0, %v1997
        %v1999 = vpop.f32.mrb[0].mxu0
        %2000 = vdwg.mxu0
        %v2001 = vrcp.pop %v1666
        %v2002 = vrcp.pop %v1669
        %v2003 = vrcp.pop %v1672
        %v2004 = vrcp.pop %v1675
        %v2005 = vrcp.pop %v1678
        %v2006 = vrcp.pop %v1681
        %v2007 = vrcp.pop %v1684
        %v2008 = vrcp.pop %v1687
        %v2009 = vrcp.pop %v1690
        %v2010 = vrcp.pop %v1693
        %v2011 = vrcp.pop %v1696
        %v2012 = vrcp.pop %v1699
        %v2013 = vrcp.pop %v1702
        %v2014 = vrcp.pop %v1705
        %v2015 = vrcp.pop %v1708
        %v2016 = vrcp.pop %v1711
        %v2017 = vrcp.pop %v1714
        %v2018 = vrcp.pop %v1717
        %v2019 = vrcp.pop %v1720
        %v2020 = vrcp.pop %v1723
        %v2021 = vrcp.pop %v1726
        %v2022 = vrcp.pop %v1729
        %v2023 = vrcp.pop %v1732
        %v2024 = vrcp.pop %v1735
        %v2025 = vrcp.pop %v1738
        %v2026 = vrcp.pop %v1741
        %v2027 = vrcp.pop %v1744
        %v2028 = vrcp.pop %v1747
        %v2029 = vrcp.pop %v1750
        %v2030 = vrcp.pop %v1753
        %v2031 = vrcp.pop %v1756
        %v2032 = vrcp.pop %v1759
        %v2033 = vmul.f32 %v1875, %v2001
        %v2034 = vmul.f32 %v1878, %v2002
        %v2035 = vmul.f32 %v1883, %v2003
        %v2036 = vmul.f32 %v1886, %v2004
        %v2037 = vmul.f32 %v1891, %v2005
        %v2038 = vmul.f32 %v1894, %v2006
        %v2039 = vmul.f32 %v1899, %v2007
        %v2040 = vmul.f32 %v1902, %v2008
        %v2041 = vmul.f32 %v1907, %v2009
        %v2042 = vmul.f32 %v1910, %v2010
        %v2043 = vmul.f32 %v1915, %v2011
        %v2044 = vmul.f32 %v1918, %v2012
        %v2045 = vmul.f32 %v1923, %v2013
        %v2046 = vmul.f32 %v1926, %v2014
        %v2047 = vmul.f32 %v1931, %v2015
        %v2048 = vmul.f32 %v1934, %v2016
        %v2049 = vmul.f32 %v1939, %v2017
        %v2050 = vmul.f32 %v1942, %v2018
        %v2051 = vmul.f32 %v1947, %v2019
        %v2052 = vmul.f32 %v1950, %v2020
        %v2053 = vmul.f32 %v1955, %v2021
        %v2054 = vmul.f32 %v1958, %v2022
        %v2055 = vmul.f32 %v1963, %v2023
        %v2056 = vmul.f32 %v1966, %v2024
        %v2057 = vmul.f32 %v1971, %v2025
        %v2058 = vmul.f32 %v1974, %v2026
        %v2059 = vmul.f32 %v1979, %v2027
        %v2060 = vmul.f32 %v1982, %v2028
        %v2061 = vmul.f32 %v1987, %v2029
        %v2062 = vmul.f32 %v1990, %v2030
        %v2063 = vmul.f32 %v1995, %v2031
        %v2064 = vmul.f32 %v1998, %v2032
        %2065 = vst [vmem:[%s251] sm:$0xff] %v2033
        %2066 = vst [vmem:[%s251 + $0x8] sm:$0xff] %v2034
        %2067 = vst [vmem:[%s251 + $0x10] sm:$0xff] %v2035
        %2068 = vst [vmem:[%s251 + $0x18] sm:$0xff] %v2036
        %2069 = vst [vmem:[%s251 + $0x20] sm:$0xff] %v2037
        %2070 = vst [vmem:[%s251 + $0x28] sm:$0xff] %v2038
        %2071 = vst [vmem:[%s251 + $0x30] sm:$0xff] %v2039
        %2072 = vst [vmem:[%s251 + $0x38] sm:$0xff] %v2040
        %2073 = vst [vmem:[%s251 + $0x40] sm:$0xff] %v2041
        %2074 = vst [vmem:[%s251 + $0x48] sm:$0xff] %v2042
        %2075 = vst [vmem:[%s251 + $0x50] sm:$0xff] %v2043
        %2076 = vst [vmem:[%s251 + $0x58] sm:$0xff] %v2044
        %2077 = vst [vmem:[%s251 + $0x60] sm:$0xff] %v2045
        %2078 = vst [vmem:[%s251 + $0x68] sm:$0xff] %v2046
        %2079 = vst [vmem:[%s251 + $0x70] sm:$0xff] %v2047
        %2080 = vst [vmem:[%s251 + $0x78] sm:$0xff] %v2048
        %2081 = vst [vmem:[%s251 + $0x80] sm:$0xff] %v2049
        %2082 = vst [vmem:[%s251 + $0x88] sm:$0xff] %v2050
        %2083 = vst [vmem:[%s251 + $0x90] sm:$0xff] %v2051
        %2084 = vst [vmem:[%s251 + $0x98] sm:$0xff] %v2052
        %2085 = vst [vmem:[%s251 + $0xa0] sm:$0xff] %v2053
        %2086 = vst [vmem:[%s251 + $0xa8] sm:$0xff] %v2054
        %2087 = vst [vmem:[%s251 + $0xb0] sm:$0xff] %v2055
        %2088 = vst [vmem:[%s251 + $0xb8] sm:$0xff] %v2056
        %2089 = vst [vmem:[%s251 + $0xc0] sm:$0xff] %v2057
        %2090 = vst [vmem:[%s251 + $0xc8] sm:$0xff] %v2058
        %2091 = vst [vmem:[%s251 + $0xd0] sm:$0xff] %v2059
        %2092 = vst [vmem:[%s251 + $0xd8] sm:$0xff] %v2060
        %2093 = vst [vmem:[%s251 + $0xe0] sm:$0xff] %v2061
        %2094 = vst [vmem:[%s251 + $0xe8] sm:$0xff] %v2062
        %2095 = vst [vmem:[%s251 + $0xf0] sm:$0xff] %v2063
        %2096 = vst [vmem:[%s251 + $0xf8] sm:$0xff] %v2064
        %s2097 = sand.u32 %s123, 1
        %s2098 = scalar_lea.sflag [#allocation4], %s2097
        %s2099 = sand.u32 %s123, 1
        %s2100 = smul.addr %s2099, 256
        %s2101 = scalar_lea.vmem [#allocation8], %s2100
        // Predicated region
        $region45: #{tpu_custom_call.1} parent=31 // pred_check
          %p2102 = pneg %p133
        $region46: #{tpu_custom_call.1} parent=31 // pred_check_branch
          %2104 = sbr.rel (%p2102) target = $region48
        $region47: #{tpu_custom_call.1} parent=31 // pred_region
          %s2105 = smul.u32 32, %s26
          %s2107 = ssub.s32 4096, 4096
          %2108 = vsyncadd %s2098, %s2107
          %s2109 = smul.addr %s25, 64
          %s2110 = sadd.s32 %s2105, %s2109
          %s2111 = smul.addr %s2110, 128
          %s2112 = scalar_lea.hbm %s3, %s2111
          %s2113 = sshll.u32 %s2101, 4
          %s2114 = int_to_ptr.vmem [resolvable:$true] %s2113
          %2119 = dma.vmem_to_hbm [thread:$0]  %s2114, 4096, %s2112, %s2098, 128, 128, 8
        $region48: #{tpu_custom_call.1} parent=31 // pred_fallthru
          _
      $region32: #{tpu_custom_call.1} parent=5 // pred_fallthru
        _
      %p2120 = scmp.le.s32.totalorder 2, %s16
      // Predicated region
      $region49: #{tpu_custom_call.1} parent=5 // pred_check
        %p2121 = pneg %p2120
      $region50: #{tpu_custom_call.1} parent=5 // pred_check_branch
        %2123 = sbr.rel (%p2121) target = $region52
      $region51: #{tpu_custom_call.1} parent=5 // pred_region
        %s2124 = ssub.s32 %s16, 2
        // Predicated region
        $region53: #{tpu_custom_call.1} parent=51 // pred_check
          %p2125 = pneg %p139
        $region54: #{tpu_custom_call.1} parent=51 // pred_check_branch
          %2127 = sbr.rel (%p2125) target = $region56
        $region55: #{tpu_custom_call.1} parent=51 // pred_region
          %s2128 = sand.u32 %s124, 1
          %s2129 = scalar_lea.sflag [#allocation4], %s2128
          %s2130 = sand.u32 %s124, 1
          %s2131 = smul.addr %s2130, 256
          %s2132 = scalar_lea.vmem [#allocation8], %s2131
          %2133 = dma.done %s2129, 4096
        $region56: #{tpu_custom_call.1} parent=51 // pred_fallthru
          _
      $region52: #{tpu_custom_call.1} parent=5 // pred_fallthru
        _
    $region6: #{tpu_custom_call.1} parent=1 // loop_footer
      %s20 = sadd.s32 1, %s16
    $region7: #{tpu_custom_call.1} parent=1 // loop_footer_branch
      %15 = sbr.rel target = $region3
    $region8: #{tpu_custom_call.1} parent=1 // loop_exit
      _
    %2134 = vsyncpa [#allocation3], 1
    %s2135 = scalar_lea.sflag [#allocation3], 1
    %2136 = vsyncpa %s2135, 1
    %2137 = vsyncpa [#allocation6], 1
    %2138 = vsyncpa [#allocation4], 1
    %s2139 = scalar_lea.sflag [#allocation4], 1
    %2140 = vsyncpa %s2139, 1

</llo_original>
